<compile_context>
chip_gen: v6e
topology: v6e:2x2x1
jax: 0.10.0
libtpu: 0.0.40
codegen_flags: <defaults>
</compile_context>

<pallas_src>
import functools
import math

import jax
import jax.numpy as jnp
import numpy as np
from jax.experimental import pallas as pl
from jax.experimental.pallas import tpu as pltpu


def _round_up(a, b):
    return -(-a // b) * b


def _pool3d_kernel(x_ref, s_ref, o_ref, *, pooling, hc, w, wo):
    # x_ref: (tm, 2, hc, 2W) -- rows, depth pair, height-pair segments,
    #                           lane axis = (h-pair, width) merged = 2W.
    # s_ref: (2W, 2*Wo) for max (even|odd width selectors, 0/1),
    #        (2W, Wo)   for avg (0.125 at the four h/w corners per column).
    # o_ref: (tm, hc*Wo) -- lane-dense output block.
    for s in range(hc):
        z0 = x_ref[:, 0, s, :]                       # (tm, 2W) depth slice 0
        z1 = x_ref[:, 1, s, :]                       # (tm, 2W) depth slice 1
        if pooling == "max":
            d = jnp.maximum(z0, z1)                  # depth pair (VPU)
            # Height pair: rolling by W on the length-2W lane axis pairs lane
            # j with lane (j +/- W) mod 2W -- the same pair either way, so the
            # rotate direction convention is irrelevant (XLU, exact).
            h = jnp.maximum(d, pltpu.roll(d, w, axis=1))
            # Width pair + decimation: one exact 0/1 selection matmul; first
            # Wo columns pick even widths, last Wo columns pick odd widths.
            eo = jnp.dot(h, s_ref[...], preferred_element_type=jnp.float32)
            r = jnp.maximum(eo[:, :wo], eo[:, wo:])  # (tm, Wo)
        else:  # avg
            d = z0.astype(jnp.float32) + z1.astype(jnp.float32)
            # Single matmul sums the four h/w corners scaled by 1/8 (exact
            # power-of-two scale); with the depth add this is the mean of 8.
            r = jnp.dot(d, s_ref[...], preferred_element_type=jnp.float32)
        o_ref[:, s * wo:(s + 1) * wo] = r.astype(o_ref.dtype)


def pool3d(x, pooling="max", block_rows=None):
    """nn.MaxPool3d / nn.AvgPool3d (kernel_size=2, stride=2, padding=0), NCDHW."""
    assert pooling in ("max", "avg")
    assert jnp.issubdtype(x.dtype, jnp.floating), (
        "selection-matmul path requires a floating dtype")
    N, C, D, H, W = x.shape
    assert D % 2 == 0 and H % 2 == 0 and W % 2 == 0, "even spatial dims required"
    Do, Ho, Wo = D // 2, H // 2, W // 2
    M = N * C * Do
    itemsize = x.dtype.itemsize

    # Free (contiguous) view; no HBM data movement in the wrapper.
    xv = x.reshape(M, 2, Ho, 2 * W)

    # Height-pair segments per block: hc must be a multiple of 8 (sublane rule
    # for the input block) and hc*Wo a multiple of 128 (lane-dense output
    # block).  Fall back to the full extent when that is impossible.
    g = 128 // math.gcd(Wo, 128)
    base = 8 * g // math.gcd(8, g)                    # lcm(8, g)
    hc = base if base <= Ho else Ho

    # Row tile: ~4 MiB input blocks, capped so per-segment (tm, 2W) working
    # values stay register/VMEM friendly and the grid keeps >= ~8 steps.
    if block_rows is None:
        blk_row_bytes = 2 * hc * 2 * W * itemsize
        tm = (4 * 1024 * 1024) // max(1, blk_row_bytes)
        tm = min(tm, max(8, (96 * 1024) // (max(2 * W, 128) * itemsize)))
        tm = min(tm, max(8, _round_up(-(-M // 8), 8)))
        tm = max(8, min(tm, 1024))
    else:
        tm = max(1, block_rows)
    tm = min(tm, M)
    if tm < M:
        tm = max(8, (tm // 8) * 8)                    # sublane-aligned unless full
        tm = min(tm, M)

    grid = (pl.cdiv(M, tm), pl.cdiv(Ho, hc))

    # Single fused constant selection operand.
    wo_idx = np.arange(Wo)
    if pooling == "max":
        smat_np = np.zeros((2 * W, 2 * Wo), dtype=np.float32)
        smat_np[2 * wo_idx, wo_idx] = 1.0             # even widths -> cols [0, Wo)
        smat_np[2 * wo_idx + 1, Wo + wo_idx] = 1.0    # odd widths  -> cols [Wo, 2Wo)
        smat = jnp.asarray(smat_np, dtype=x.dtype)
    else:
        smat_np = np.zeros((2 * W, Wo), dtype=np.float32)
        for rows in (2 * wo_idx, 2 * wo_idx + 1,
                     W + 2 * wo_idx, W + 2 * wo_idx + 1):
            smat_np[rows, wo_idx] = 0.125
        smat = jnp.asarray(smat_np, dtype=jnp.float32)
    s_cols = smat.shape[1]

    n_out = M * Ho * Wo
    cost = pl.CostEstimate(
        flops=8 * n_out + 2 * (2 * W) * s_cols * M * Ho,
        transcendentals=0,
        bytes_accessed=x.size * itemsize + n_out * itemsize
        + smat.size * smat.dtype.itemsize,
    )

    out = pl.pallas_call(
        functools.partial(_pool3d_kernel, pooling=pooling, hc=hc, w=W, wo=Wo),
        out_shape=jax.ShapeDtypeStruct((M, Ho * Wo), x.dtype),
        grid_spec=pltpu.PrefetchScalarGridSpec(
            num_scalar_prefetch=0,
            grid=grid,
            in_specs=[
                pl.BlockSpec((tm, 2, hc, 2 * W), lambda i, j: (i, 0, j, 0)),
                pl.BlockSpec((2 * W, s_cols), lambda i, j: (0, 0)),
            ],
            out_specs=pl.BlockSpec((tm, hc * Wo), lambda i, j: (i, j)),
        ),
        compiler_params=pltpu.CompilerParams(
            dimension_semantics=("parallel", "parallel"),
            vmem_limit_bytes=32 * 1024 * 1024,
        ),
        cost_estimate=cost,
    )(xv, smat)

    return out.reshape(N, C, Do, Ho, Wo)


def pool3d_ref(x, pooling):
    N, C, D, H, W = x.shape
    x6 = x.reshape(N, C, D // 2, 2, H // 2, 2, W // 2, 2)
    if pooling == "max":
        return x6.max(axis=(3, 5, 7))
    return x6.mean(axis=(3, 5, 7))


if __name__ == "__main__":
    key = jax.random.PRNGKey(0)
    # NCDHW, matching PyTorch's MaxPool3d/AvgPool3d input convention.
    N, C, D, H, W = 2, 4, 8, 16, 32
    x = jax.random.normal(key, (N, C, D, H, W), dtype=jnp.float32)

    for pooling in ("max", "avg"):
        # Default tiling, and a ragged multi-step grid (M=32, tm=24).
        for block_rows in (None, 24):
            y = pool3d(x, pooling, block_rows=block_rows)
            jax.block_until_ready(y)
            y_ref = pool3d_ref(x, pooling)
            assert y.shape == (N, C, D // 2, H // 2, W // 2)
            assert jnp.allclose(y, y_ref, atol=1e-5, rtol=1e-5), pooling

    print("KERNEL_OK")
</pallas_src>

<mosaic_0001>
module attributes {stable_mosaic.version = 11 : i64} {
  func.func @_pool3d_kernel(%arg0: i32, %arg1: i32, %arg2: memref<8x2x8x64xf32, #tpu.memory_space<vmem>>, %arg3: memref<64x32xf32, #tpu.memory_space<vmem>>, %arg4: memref<8x128xf32, #tpu.memory_space<vmem>>) attributes {dimension_semantics = [#tpu.dimension_semantics<parallel>, #tpu.dimension_semantics<parallel>], iteration_bounds = array<i64: 4, 1>, scalar_prefetch = 0 : i64, scratch_operands = 0 : i64, tpu.core_type = #tpu.core_type<tc>, window_params = [{transform_indices = @transform_0, window_bounds = array<i64: 8, 2, 8, 64>}, {pipeline_mode = #tpu.pipeline_mode<synchronous>, transform_indices = @transform_1, window_bounds = array<i64: 64, 32>}, {transform_indices = @transform_2, window_bounds = array<i64: 8, 128>}]} {
    %c0 = arith.constant 0 : index
    %c0_0 = arith.constant 0 : index
    %c0_1 = arith.constant 0 : index
    %c0_2 = arith.constant 0 : index
    %0 = vector.load %arg2[%c0, %c0_0, %c0_1, %c0_2] : memref<8x2x8x64xf32, #tpu.memory_space<vmem>>, vector<8x1x1x64xf32>
    %1 = vector.shape_cast %0 : vector<8x1x1x64xf32> to vector<8x64xf32>
    %c0_3 = arith.constant 0 : index
    %c1 = arith.constant 1 : index
    %c0_4 = arith.constant 0 : index
    %c0_5 = arith.constant 0 : index
    %2 = vector.load %arg2[%c0_3, %c1, %c0_4, %c0_5] : memref<8x2x8x64xf32, #tpu.memory_space<vmem>>, vector<8x1x1x64xf32>
    %3 = vector.shape_cast %2 : vector<8x1x1x64xf32> to vector<8x64xf32>
    %4 = arith.maximumf %1, %3 : vector<8x64xf32>
    %c32_i32 = arith.constant 32 : i32
    %5 = tpu.dynamic_rotate %4 by %c32_i32 dim 1 : vector<8x64xf32>, i32 -> vector<8x64xf32>
    %6 = arith.maximumf %4, %5 : vector<8x64xf32>
    %c0_6 = arith.constant 0 : index
    %c0_7 = arith.constant 0 : index
    %7 = vector.load %arg3[%c0_6, %c0_7] : memref<64x32xf32, #tpu.memory_space<vmem>>, vector<64x32xf32>
    %cst = arith.constant dense<0.000000e+00> : vector<8x32xf32>
    %8 = tpu.matmul %6, %7, %cst {dimension_numbers = #tpu.dot_dimension_numbers<[1], [0], [0], [1], [0, 0, 1, 1], [], []>} : vector<8x64xf32>, vector<64x32xf32>, vector<8x32xf32> -> vector<8x32xf32>
    %9 = vector.extract_strided_slice %8 {offsets = [0, 0], sizes = [8, 16], strides = [1, 1]} : vector<8x32xf32> to vector<8x16xf32>
    %10 = vector.extract_strided_slice %8 {offsets = [0, 16], sizes = [8, 16], strides = [1, 1]} : vector<8x32xf32> to vector<8x16xf32>
    %11 = arith.maximumf %9, %10 : vector<8x16xf32>
    %c0_8 = arith.constant 0 : index
    %c0_9 = arith.constant 0 : index
    %12 = vector.load %arg4[%c0_8, %c0_9] : memref<8x128xf32, #tpu.memory_space<vmem>>, vector<8x16xf32>
    tpu.vector_store %arg4[%c0_8, %c0_9], %11 {strides = array<i32>} : memref<8x128xf32, #tpu.memory_space<vmem>>, vector<8x16xf32>,
    %c0_10 = arith.constant 0 : index
    %c0_11 = arith.constant 0 : index
    %c1_12 = arith.constant 1 : index
    %c0_13 = arith.constant 0 : index
    %13 = vector.load %arg2[%c0_10, %c0_11, %c1_12, %c0_13] : memref<8x2x8x64xf32, #tpu.memory_space<vmem>>, vector<8x1x1x64xf32>
    %14 = vector.shape_cast %13 : vector<8x1x1x64xf32> to vector<8x64xf32>
    %c0_14 = arith.constant 0 : index
    %c1_15 = arith.constant 1 : index
    %c1_16 = arith.constant 1 : index
    %c0_17 = arith.constant 0 : index
    %15 = vector.load %arg2[%c0_14, %c1_15, %c1_16, %c0_17] : memref<8x2x8x64xf32, #tpu.memory_space<vmem>>, vector<8x1x1x64xf32>
    %16 = vector.shape_cast %15 : vector<8x1x1x64xf32> to vector<8x64xf32>
    %17 = arith.maximumf %14, %16 : vector<8x64xf32>
    %c32_i32_18 = arith.constant 32 : i32
    %18 = tpu.dynamic_rotate %17 by %c32_i32_18 dim 1 : vector<8x64xf32>, i32 -> vector<8x64xf32>
    %19 = arith.maximumf %17, %18 : vector<8x64xf32>
    %c0_19 = arith.constant 0 : index
    %c0_20 = arith.constant 0 : index
    %20 = vector.load %arg3[%c0_19, %c0_20] : memref<64x32xf32, #tpu.memory_space<vmem>>, vector<64x32xf32>
    %cst_21 = arith.constant dense<0.000000e+00> : vector<8x32xf32>
    %21 = tpu.matmul %19, %20, %cst_21 {dimension_numbers = #tpu.dot_dimension_numbers<[1], [0], [0], [1], [0, 0, 1, 1], [], []>} : vector<8x64xf32>, vector<64x32xf32>, vector<8x32xf32> -> vector<8x32xf32>
    %22 = vector.extract_strided_slice %21 {offsets = [0, 0], sizes = [8, 16], strides = [1, 1]} : vector<8x32xf32> to vector<8x16xf32>
    %23 = vector.extract_strided_slice %21 {offsets = [0, 16], sizes = [8, 16], strides = [1, 1]} : vector<8x32xf32> to vector<8x16xf32>
    %24 = arith.maximumf %22, %23 : vector<8x16xf32>
    %c0_22 = arith.constant 0 : index
    %c16 = arith.constant 16 : index
    %25 = vector.load %arg4[%c0_22, %c16] : memref<8x128xf32, #tpu.memory_space<vmem>>, vector<8x16xf32>
    tpu.vector_store %arg4[%c0_22, %c16], %24 {strides = array<i32>} : memref<8x128xf32, #tpu.memory_space<vmem>>, vector<8x16xf32>,
    %c0_23 = arith.constant 0 : index
    %c0_24 = arith.constant 0 : index
    %c2 = arith.constant 2 : index
    %c0_25 = arith.constant 0 : index
    %26 = vector.load %arg2[%c0_23, %c0_24, %c2, %c0_25] : memref<8x2x8x64xf32, #tpu.memory_space<vmem>>, vector<8x1x1x64xf32>
    %27 = vector.shape_cast %26 : vector<8x1x1x64xf32> to vector<8x64xf32>
    %c0_26 = arith.constant 0 : index
    %c1_27 = arith.constant 1 : index
    %c2_28 = arith.constant 2 : index
    %c0_29 = arith.constant 0 : index
    %28 = vector.load %arg2[%c0_26, %c1_27, %c2_28, %c0_29] : memref<8x2x8x64xf32, #tpu.memory_space<vmem>>, vector<8x1x1x64xf32>
    %29 = vector.shape_cast %28 : vector<8x1x1x64xf32> to vector<8x64xf32>
    %30 = arith.maximumf %27, %29 : vector<8x64xf32>
    %c32_i32_30 = arith.constant 32 : i32
    %31 = tpu.dynamic_rotate %30 by %c32_i32_30 dim 1 : vector<8x64xf32>, i32 -> vector<8x64xf32>
    %32 = arith.maximumf %30, %31 : vector<8x64xf32>
    %c0_31 = arith.constant 0 : index
    %c0_32 = arith.constant 0 : index
    %33 = vector.load %arg3[%c0_31, %c0_32] : memref<64x32xf32, #tpu.memory_space<vmem>>, vector<64x32xf32>
    %cst_33 = arith.constant dense<0.000000e+00> : vector<8x32xf32>
    %34 = tpu.matmul %32, %33, %cst_33 {dimension_numbers = #tpu.dot_dimension_numbers<[1], [0], [0], [1], [0, 0, 1, 1], [], []>} : vector<8x64xf32>, vector<64x32xf32>, vector<8x32xf32> -> vector<8x32xf32>
    %35 = vector.extract_strided_slice %34 {offsets = [0, 0], sizes = [8, 16], strides = [1, 1]} : vector<8x32xf32> to vector<8x16xf32>
    %36 = vector.extract_strided_slice %34 {offsets = [0, 16], sizes = [8, 16], strides = [1, 1]} : vector<8x32xf32> to vector<8x16xf32>
    %37 = arith.maximumf %35, %36 : vector<8x16xf32>
    %c0_34 = arith.constant 0 : index
    %c32 = arith.constant 32 : index
    %38 = vector.load %arg4[%c0_34, %c32] : memref<8x128xf32, #tpu.memory_space<vmem>>, vector<8x16xf32>
    tpu.vector_store %arg4[%c0_34, %c32], %37 {strides = array<i32>} : memref<8x128xf32, #tpu.memory_space<vmem>>, vector<8x16xf32>,
    %c0_35 = arith.constant 0 : index
    %c0_36 = arith.constant 0 : index
    %c3 = arith.constant 3 : index
    %c0_37 = arith.constant 0 : index
    %39 = vector.load %arg2[%c0_35, %c0_36, %c3, %c0_37] : memref<8x2x8x64xf32, #tpu.memory_space<vmem>>, vector<8x1x1x64xf32>
    %40 = vector.shape_cast %39 : vector<8x1x1x64xf32> to vector<8x64xf32>
    %c0_38 = arith.constant 0 : index
    %c1_39 = arith.constant 1 : index
    %c3_40 = arith.constant 3 : index
    %c0_41 = arith.constant 0 : index
    %41 = vector.load %arg2[%c0_38, %c1_39, %c3_40, %c0_41] : memref<8x2x8x64xf32, #tpu.memory_space<vmem>>, vector<8x1x1x64xf32>
    %42 = vector.shape_cast %41 : vector<8x1x1x64xf32> to vector<8x64xf32>
    %43 = arith.maximumf %40, %42 : vector<8x64xf32>
    %c32_i32_42 = arith.constant 32 : i32
    %44 = tpu.dynamic_rotate %43 by %c32_i32_42 dim 1 : vector<8x64xf32>, i32 -> vector<8x64xf32>
    %45 = arith.maximumf %43, %44 : vector<8x64xf32>
    %c0_43 = arith.constant 0 : index
    %c0_44 = arith.constant 0 : index
    %46 = vector.load %arg3[%c0_43, %c0_44] : memref<64x32xf32, #tpu.memory_space<vmem>>, vector<64x32xf32>
    %cst_45 = arith.constant dense<0.000000e+00> : vector<8x32xf32>
    %47 = tpu.matmul %45, %46, %cst_45 {dimension_numbers = #tpu.dot_dimension_numbers<[1], [0], [0], [1], [0, 0, 1, 1], [], []>} : vector<8x64xf32>, vector<64x32xf32>, vector<8x32xf32> -> vector<8x32xf32>
    %48 = vector.extract_strided_slice %47 {offsets = [0, 0], sizes = [8, 16], strides = [1, 1]} : vector<8x32xf32> to vector<8x16xf32>
    %49 = vector.extract_strided_slice %47 {offsets = [0, 16], sizes = [8, 16], strides = [1, 1]} : vector<8x32xf32> to vector<8x16xf32>
    %50 = arith.maximumf %48, %49 : vector<8x16xf32>
    %c0_46 = arith.constant 0 : index
    %c48 = arith.constant 48 : index
    %51 = vector.load %arg4[%c0_46, %c48] : memref<8x128xf32, #tpu.memory_space<vmem>>, vector<8x16xf32>
    tpu.vector_store %arg4[%c0_46, %c48], %50 {strides = array<i32>} : memref<8x128xf32, #tpu.memory_space<vmem>>, vector<8x16xf32>,
    %c0_47 = arith.constant 0 : index
    %c0_48 = arith.constant 0 : index
    %c4 = arith.constant 4 : index
    %c0_49 = arith.constant 0 : index
    %52 = vector.load %arg2[%c0_47, %c0_48, %c4, %c0_49] : memref<8x2x8x64xf32, #tpu.memory_space<vmem>>, vector<8x1x1x64xf32>
    %53 = vector.shape_cast %52 : vector<8x1x1x64xf32> to vector<8x64xf32>
    %c0_50 = arith.constant 0 : index
    %c1_51 = arith.constant 1 : index
    %c4_52 = arith.constant 4 : index
    %c0_53 = arith.constant 0 : index
    %54 = vector.load %arg2[%c0_50, %c1_51, %c4_52, %c0_53] : memref<8x2x8x64xf32, #tpu.memory_space<vmem>>, vector<8x1x1x64xf32>
    %55 = vector.shape_cast %54 : vector<8x1x1x64xf32> to vector<8x64xf32>
    %56 = arith.maximumf %53, %55 : vector<8x64xf32>
    %c32_i32_54 = arith.constant 32 : i32
    %57 = tpu.dynamic_rotate %56 by %c32_i32_54 dim 1 : vector<8x64xf32>, i32 -> vector<8x64xf32>
    %58 = arith.maximumf %56, %57 : vector<8x64xf32>
    %c0_55 = arith.constant 0 : index
    %c0_56 = arith.constant 0 : index
    %59 = vector.load %arg3[%c0_55, %c0_56] : memref<64x32xf32, #tpu.memory_space<vmem>>, vector<64x32xf32>
    %cst_57 = arith.constant dense<0.000000e+00> : vector<8x32xf32>
    %60 = tpu.matmul %58, %59, %cst_57 {dimension_numbers = #tpu.dot_dimension_numbers<[1], [0], [0], [1], [0, 0, 1, 1], [], []>} : vector<8x64xf32>, vector<64x32xf32>, vector<8x32xf32> -> vector<8x32xf32>
    %61 = vector.extract_strided_slice %60 {offsets = [0, 0], sizes = [8, 16], strides = [1, 1]} : vector<8x32xf32> to vector<8x16xf32>
    %62 = vector.extract_strided_slice %60 {offsets = [0, 16], sizes = [8, 16], strides = [1, 1]} : vector<8x32xf32> to vector<8x16xf32>
    %63 = arith.maximumf %61, %62 : vector<8x16xf32>
    %c0_58 = arith.constant 0 : index
    %c64 = arith.constant 64 : index
    %64 = vector.load %arg4[%c0_58, %c64] : memref<8x128xf32, #tpu.memory_space<vmem>>, vector<8x16xf32>
    tpu.vector_store %arg4[%c0_58, %c64], %63 {strides = array<i32>} : memref<8x128xf32, #tpu.memory_space<vmem>>, vector<8x16xf32>,
    %c0_59 = arith.constant 0 : index
    %c0_60 = arith.constant 0 : index
    %c5 = arith.constant 5 : index
    %c0_61 = arith.constant 0 : index
    %65 = vector.load %arg2[%c0_59, %c0_60, %c5, %c0_61] : memref<8x2x8x64xf32, #tpu.memory_space<vmem>>, vector<8x1x1x64xf32>
    %66 = vector.shape_cast %65 : vector<8x1x1x64xf32> to vector<8x64xf32>
    %c0_62 = arith.constant 0 : index
    %c1_63 = arith.constant 1 : index
    %c5_64 = arith.constant 5 : index
    %c0_65 = arith.constant 0 : index
    %67 = vector.load %arg2[%c0_62, %c1_63, %c5_64, %c0_65] : memref<8x2x8x64xf32, #tpu.memory_space<vmem>>, vector<8x1x1x64xf32>
    %68 = vector.shape_cast %67 : vector<8x1x1x64xf32> to vector<8x64xf32>
    %69 = arith.maximumf %66, %68 : vector<8x64xf32>
    %c32_i32_66 = arith.constant 32 : i32
    %70 = tpu.dynamic_rotate %69 by %c32_i32_66 dim 1 : vector<8x64xf32>, i32 -> vector<8x64xf32>
    %71 = arith.maximumf %69, %70 : vector<8x64xf32>
    %c0_67 = arith.constant 0 : index
    %c0_68 = arith.constant 0 : index
    %72 = vector.load %arg3[%c0_67, %c0_68] : memref<64x32xf32, #tpu.memory_space<vmem>>, vector<64x32xf32>
    %cst_69 = arith.constant dense<0.000000e+00> : vector<8x32xf32>
    %73 = tpu.matmul %71, %72, %cst_69 {dimension_numbers = #tpu.dot_dimension_numbers<[1], [0], [0], [1], [0, 0, 1, 1], [], []>} : vector<8x64xf32>, vector<64x32xf32>, vector<8x32xf32> -> vector<8x32xf32>
    %74 = vector.extract_strided_slice %73 {offsets = [0, 0], sizes = [8, 16], strides = [1, 1]} : vector<8x32xf32> to vector<8x16xf32>
    %75 = vector.extract_strided_slice %73 {offsets = [0, 16], sizes = [8, 16], strides = [1, 1]} : vector<8x32xf32> to vector<8x16xf32>
    %76 = arith.maximumf %74, %75 : vector<8x16xf32>
    %c0_70 = arith.constant 0 : index
    %c80 = arith.constant 80 : index
    %77 = vector.load %arg4[%c0_70, %c80] : memref<8x128xf32, #tpu.memory_space<vmem>>, vector<8x16xf32>
    tpu.vector_store %arg4[%c0_70, %c80], %76 {strides = array<i32>} : memref<8x128xf32, #tpu.memory_space<vmem>>, vector<8x16xf32>,
    %c0_71 = arith.constant 0 : index
    %c0_72 = arith.constant 0 : index
    %c6 = arith.constant 6 : index
    %c0_73 = arith.constant 0 : index
    %78 = vector.load %arg2[%c0_71, %c0_72, %c6, %c0_73] : memref<8x2x8x64xf32, #tpu.memory_space<vmem>>, vector<8x1x1x64xf32>
    %79 = vector.shape_cast %78 : vector<8x1x1x64xf32> to vector<8x64xf32>
    %c0_74 = arith.constant 0 : index
    %c1_75 = arith.constant 1 : index
    %c6_76 = arith.constant 6 : index
    %c0_77 = arith.constant 0 : index
    %80 = vector.load %arg2[%c0_74, %c1_75, %c6_76, %c0_77] : memref<8x2x8x64xf32, #tpu.memory_space<vmem>>, vector<8x1x1x64xf32>
    %81 = vector.shape_cast %80 : vector<8x1x1x64xf32> to vector<8x64xf32>
    %82 = arith.maximumf %79, %81 : vector<8x64xf32>
    %c32_i32_78 = arith.constant 32 : i32
    %83 = tpu.dynamic_rotate %82 by %c32_i32_78 dim 1 : vector<8x64xf32>, i32 -> vector<8x64xf32>
    %84 = arith.maximumf %82, %83 : vector<8x64xf32>
    %c0_79 = arith.constant 0 : index
    %c0_80 = arith.constant 0 : index
    %85 = vector.load %arg3[%c0_79, %c0_80] : memref<64x32xf32, #tpu.memory_space<vmem>>, vector<64x32xf32>
    %cst_81 = arith.constant dense<0.000000e+00> : vector<8x32xf32>
    %86 = tpu.matmul %84, %85, %cst_81 {dimension_numbers = #tpu.dot_dimension_numbers<[1], [0], [0], [1], [0, 0, 1, 1], [], []>} : vector<8x64xf32>, vector<64x32xf32>, vector<8x32xf32> -> vector<8x32xf32>
    %87 = vector.extract_strided_slice %86 {offsets = [0, 0], sizes = [8, 16], strides = [1, 1]} : vector<8x32xf32> to vector<8x16xf32>
    %88 = vector.extract_strided_slice %86 {offsets = [0, 16], sizes = [8, 16], strides = [1, 1]} : vector<8x32xf32> to vector<8x16xf32>
    %89 = arith.maximumf %87, %88 : vector<8x16xf32>
    %c0_82 = arith.constant 0 : index
    %c96 = arith.constant 96 : index
    %90 = vector.load %arg4[%c0_82, %c96] : memref<8x128xf32, #tpu.memory_space<vmem>>, vector<8x16xf32>
    tpu.vector_store %arg4[%c0_82, %c96], %89 {strides = array<i32>} : memref<8x128xf32, #tpu.memory_space<vmem>>, vector<8x16xf32>,
    %c0_83 = arith.constant 0 : index
    %c0_84 = arith.constant 0 : index
    %c7 = arith.constant 7 : index
    %c0_85 = arith.constant 0 : index
    %91 = vector.load %arg2[%c0_83, %c0_84, %c7, %c0_85] : memref<8x2x8x64xf32, #tpu.memory_space<vmem>>, vector<8x1x1x64xf32>
    %92 = vector.shape_cast %91 : vector<8x1x1x64xf32> to vector<8x64xf32>
    %c0_86 = arith.constant 0 : index
    %c1_87 = arith.constant 1 : index
    %c7_88 = arith.constant 7 : index
    %c0_89 = arith.constant 0 : index
    %93 = vector.load %arg2[%c0_86, %c1_87, %c7_88, %c0_89] : memref<8x2x8x64xf32, #tpu.memory_space<vmem>>, vector<8x1x1x64xf32>
    %94 = vector.shape_cast %93 : vector<8x1x1x64xf32> to vector<8x64xf32>
    %95 = arith.maximumf %92, %94 : vector<8x64xf32>
    %c32_i32_90 = arith.constant 32 : i32
    %96 = tpu.dynamic_rotate %95 by %c32_i32_90 dim 1 : vector<8x64xf32>, i32 -> vector<8x64xf32>
    %97 = arith.maximumf %95, %96 : vector<8x64xf32>
    %c0_91 = arith.constant 0 : index
    %c0_92 = arith.constant 0 : index
    %98 = vector.load %arg3[%c0_91, %c0_92] : memref<64x32xf32, #tpu.memory_space<vmem>>, vector<64x32xf32>
    %cst_93 = arith.constant dense<0.000000e+00> : vector<8x32xf32>
    %99 = tpu.matmul %97, %98, %cst_93 {dimension_numbers = #tpu.dot_dimension_numbers<[1], [0], [0], [1], [0, 0, 1, 1], [], []>} : vector<8x64xf32>, vector<64x32xf32>, vector<8x32xf32> -> vector<8x32xf32>
    %100 = vector.extract_strided_slice %99 {offsets = [0, 0], sizes = [8, 16], strides = [1, 1]} : vector<8x32xf32> to vector<8x16xf32>
    %101 = vector.extract_strided_slice %99 {offsets = [0, 16], sizes = [8, 16], strides = [1, 1]} : vector<8x32xf32> to vector<8x16xf32>
    %102 = arith.maximumf %100, %101 : vector<8x16xf32>
    %c0_94 = arith.constant 0 : index
    %c112 = arith.constant 112 : index
    %103 = vector.load %arg4[%c0_94, %c112] : memref<8x128xf32, #tpu.memory_space<vmem>>, vector<8x16xf32>
    tpu.vector_store %arg4[%c0_94, %c112], %102 {strides = array<i32>} : memref<8x128xf32, #tpu.memory_space<vmem>>, vector<8x16xf32>,
    return
  }
  func.func @transform_0(%arg0: i32, %arg1: i32) -> (i32, i32, i32, i32) {
    %c0_i32 = arith.constant 0 : i32
    %c0_i32_0 = arith.constant 0 : i32
    %c0_i32_1 = arith.constant 0 : i32
    return %arg0, %c0_i32, %arg1, %c0_i32_0 : i32, i32, i32, i32
  }
  func.func @transform_1(%arg0: i32, %arg1: i32) -> (i32, i32) {
    %c0_i32 = arith.constant 0 : i32
    %c0_i32_0 = arith.constant 0 : i32
    %c0_i32_1 = arith.constant 0 : i32
    return %c0_i32, %c0_i32_0 : i32, i32
  }
  func.func @transform_2(%arg0: i32, %arg1: i32) -> (i32, i32) {
    %c0_i32 = arith.constant 0 : i32
    return %arg0, %arg1 : i32, i32
  }
}

</mosaic_0001>

<llo_original>
// kernel: tpu_custom_call.1
$region0: #{tpu_custom_call.1}
  #allocation0 [shape = 'u32[]', space=smem, size = 0x4, offset = 0x4, fixed_abs, tag = 'smem constant byte address 0x4 - core index']
  #allocation1 [shape = 'u32[144,128]{1,0:T(1,128)}', space=vmem, size = 0x12000, scoped, tag = 'internal scratch']
  %s0 = inlined_call_operand.hbm [shape: f32[32,2,8,64], index: 0, kind: input, shape index: {}]
  %s1 = inlined_call_operand.vmem [shape: f32[64,32], index: 1, kind: input, shape index: {}]
  %s2 = inlined_call_operand.hbm [shape: f32[32,128], index: 2, kind: output, shape index: {}]
  %s3 = sld [smem:[#allocation0]]
  $region45: #{tpu_custom_call.1} parent=0
    _
  %s5 = ssub.s32 1, %s3
  %s6 = scalar_select 0, %s5, %s3
  $region1: #{tpu_custom_call.1} parent=0
    #allocation2 [shape = 'u8[131072]{0}', space=vmem, size = 0x20000, scoped, tag = 'input window, operand 0']
    #allocation3 [shape = 's32[2]{0}', space=sflag, size = 0x8, scoped, tag = 'scoped memory for tpu_custom_call.1']
    #allocation4 [shape = 's32[2]{0}', space=sflag, size = 0x8, scoped, tag = 'scoped memory for tpu_custom_call.1']
    #allocation5 [shape = 'u8[8192]{0}', space=vmem, size = 0x2000, scoped, tag = 'output window, operand 0']
    %7 = vsyncpa [#allocation3], 0
    %s8 = scalar_lea.sflag [#allocation3], 1
    %9 = vsyncpa %s8, 0
    %10 = vsyncpa [#allocation4], 0
    %s11 = scalar_lea.sflag [#allocation4], 1
    %12 = vsyncpa %s11, 0
    loop: start=0, step=1, limit=6
    $region2: #{tpu_custom_call.1} parent=1 // loop_pre_header
      _
    $region3: #{tpu_custom_call.1} parent=1 // loop_header
      %s14 = sphi 0, %s18
      %p15 = scmp.ge.s32.totalorder %s14, 6
      %s21 = sphi 0, %s33
      %s22 = sphi 0, %s29
      %s23 = sphi 0, %s21
      %s24 = sphi 0, %s22
      %s25 = sphi 0, %s23
      %s26 = sphi 0, %s24
      %s38 = sphi 0, %s40
      %s41 = sphi 0, %s38
      %s42 = sphi 0, %s41
      %s58 = sphi 0, %s42
      %s62 = sphi 0, %s62
      %s64 = sphi 0, %s62
      %s65 = sphi 0, %s64
      %s79 = sphi 0, %s65
      %s87 = sphi 0, %s89
      %s90 = sphi 0, %s87
      %s91 = sphi 0, %s90
      %s107 = sphi 0, %s91
    $region4: #{tpu_custom_call.1} parent=1 // loop_header_branch
      %17 = sbr.rel (%p15) target = $region8
    $region5: #{tpu_custom_call.1} parent=1 // loop_body
      %s19 = ssub.s32 %s14, 1
      %s20 = ssub.s32 %s14, 2
      %s27 = sadd.s32 1, %s22
      %p28 = scmp.ge.s32.totalorder %s27, 1
      %s29 = scalar_select %p28, 0, %s27
      %s30 = sadd.s32 1, %s21
      %s31 = scalar_select %p28, %s30, %s21
      %p32 = scmp.ge.s32.totalorder %s31, 4
      %s33 = scalar_select %p32, 0, %s31
      %s34 = ssub.s32 %s21, %s33
      %s35 = ssub.s32 %s22, %s29
      %s36 = sor.u32 %s34, %s35
      %p37 = scmp.eq.s32.totalorder %s36, 0
      %s39 = sadd.s32 %s38, 1
      %s40 = scalar_select %p37, %s38, %s39
      %p43 = pneg %p37
      %p44 = scmp.eq.s32.totalorder %s14, 3
      %p45 = por %p43, %p44
      %p46 = scmp.ne.s32.totalorder %s38, %s41
      %p47 = scmp.eq.s32.totalorder %s14, 0
      %p48 = por %p46, %p47
      %p49 = scmp.ne.s32.totalorder %s38, %s41
      %p50 = scmp.eq.s32.totalorder %s19, 3
      %p51 = por %p49, %p50
      %p52 = scmp.ne.s32.totalorder %s41, %s42
      %p53 = scmp.eq.s32.totalorder %s19, 0
      %p54 = por %p52, %p53
      %p55 = scmp.ne.s32.totalorder %s41, %s42
      %p56 = scmp.eq.s32.totalorder %s20, 3
      %p57 = por %p55, %p56
      %p59 = scmp.ne.s32.totalorder %s42, %s58
      %p60 = scmp.eq.s32.totalorder %s20, 0
      %p61 = por %p59, %p60
      %s63 = sadd.s32 %s62, 1
      %p66 = scmp.eq.s32.totalorder %s14, 3
      %p67 = scmp.ne.s32.totalorder %s62, %s64
      %p68 = scmp.eq.s32.totalorder %s14, 0
      %p69 = por %p67, %p68
      %p70 = scmp.ne.s32.totalorder %s62, %s64
      %p71 = scmp.eq.s32.totalorder %s19, 3
      %p72 = por %p70, %p71
      %p73 = scmp.ne.s32.totalorder %s64, %s65
      %p74 = scmp.eq.s32.totalorder %s19, 0
      %p75 = por %p73, %p74
      %p76 = scmp.ne.s32.totalorder %s64, %s65
      %p77 = scmp.eq.s32.totalorder %s20, 3
      %p78 = por %p76, %p77
      %p80 = scmp.ne.s32.totalorder %s65, %s79
      %p81 = scmp.eq.s32.totalorder %s20, 0
      %p82 = por %p80, %p81
      %s83 = ssub.s32 %s21, %s33
      %s84 = ssub.s32 %s22, %s29
      %s85 = sor.u32 %s83, %s84
      %p86 = scmp.eq.s32.totalorder %s85, 0
      %s88 = sadd.s32 %s87, 1
      %s89 = scalar_select %p86, %s87, %s88
      %p92 = pneg %p86
      %p93 = scmp.eq.s32.totalorder %s14, 3
      %p94 = por %p92, %p93
      %p95 = scmp.ne.s32.totalorder %s87, %s90
      %p96 = scmp.eq.s32.totalorder %s14, 0
      %p97 = por %p95, %p96
      %p98 = scmp.ne.s32.totalorder %s87, %s90
      %p99 = scmp.eq.s32.totalorder %s19, 3
      %p100 = por %p98, %p99
      %p101 = scmp.ne.s32.totalorder %s90, %s91
      %p102 = scmp.eq.s32.totalorder %s19, 0
      %p103 = por %p101, %p102
      %p104 = scmp.ne.s32.totalorder %s90, %s91
      %p105 = scmp.eq.s32.totalorder %s20, 3
      %p106 = por %p104, %p105
      %p108 = scmp.ne.s32.totalorder %s91, %s107
      %p109 = scmp.eq.s32.totalorder %s20, 0
      %p110 = por %p108, %p109
      %p111 = scmp.le.s32.totalorder 1, %s14
      %p112 = scmp.lt.s32.totalorder %s14, 5
      %p113 = pnand %p111, %p112
      %p114 = pneg %p113
      // Predicated region
      $region9: #{tpu_custom_call.1} parent=5 // pred_check
        _
      $region10: #{tpu_custom_call.1} parent=5 // pred_check_branch
        %116 = sbr.rel (%p113) target = $region12
      $region11: #{tpu_custom_call.1} parent=5 // pred_region
        %s117 = ssub.s32 %s14, 1
        // Predicated region
        $region13: #{tpu_custom_call.1} parent=11 // pred_check
          %p118 = pneg %p75
        $region14: #{tpu_custom_call.1} parent=11 // pred_check_branch
          %120 = sbr.rel (%p118) target = $region16
        $region15: #{tpu_custom_call.1} parent=11 // pred_region
          _
        $region16: #{tpu_custom_call.1} parent=11 // pred_fallthru
          _
      $region12: #{tpu_custom_call.1} parent=5 // pred_fallthru
        _
      %p121 = scmp.lt.s32.totalorder %s14, 4
      // Predicated region
      $region17: #{tpu_custom_call.1} parent=5 // pred_check
        %p122 = pneg %p121
      $region18: #{tpu_custom_call.1} parent=5 // pred_check_branch
        %124 = sbr.rel (%p122) target = $region20
      $region19: #{tpu_custom_call.1} parent=5 // pred_region
        // Predicated region
        $region21: #{tpu_custom_call.1} parent=19 // pred_check
          %p125 = pneg %p48
        $region22: #{tpu_custom_call.1} parent=19 // pred_check_branch
          %127 = sbr.rel (%p125) target = $region24
        $region23: #{tpu_custom_call.1} parent=19 // pred_region
          %s128 = sand.u32 %s38, 1
          %s129 = scalar_lea.sflag [#allocation3], %s128
          %s130 = sand.u32 %s38, 1
          %s131 = smul.addr %s130, 128
          %s132 = scalar_lea.vmem [#allocation2], %s131
          %s133 = smul.u32 8, %s21
          %s135 = ssub.s32 2048, 2048
          %136 = vsyncadd %s129, %s135
          %s137 = smul.addr %s133, 2
          %s138 = sadd.s32 %s22, %s137
          %s139 = smul.addr %s138, 128
          %s140 = scalar_lea.hbm %s0, %s139
          %s141 = sshll.u32 %s132, 4
          %s142 = int_to_ptr.vmem [resolvable:$true] %s141
          %147 = dma.hbm_to_vmem [thread:$0]  %s140, 2048, %s142, %s129, 128, 128, 8
        $region24: #{tpu_custom_call.1} parent=19 // pred_fallthru
          _
      $region20: #{tpu_custom_call.1} parent=5 // pred_fallthru
        _
      %p148 = scmp.le.s32.totalorder 1, %s14
      %p149 = scmp.lt.s32.totalorder %s14, 5
      %p150 = pnand %p148, %p149
      %p151 = pneg %p150
      // Predicated region
      $region25: #{tpu_custom_call.1} parent=5 // pred_check
        _
      $region26: #{tpu_custom_call.1} parent=5 // pred_check_branch
        %153 = sbr.rel (%p150) target = $region28
      $region27: #{tpu_custom_call.1} parent=5 // pred_region
        %s154 = ssub.s32 %s14, 1
        %s155 = sand.u32 %s41, 1
        %s156 = scalar_lea.sflag [#allocation3], %s155
        %s157 = sand.u32 %s41, 1
        %s158 = smul.addr %s157, 128
        %s159 = scalar_lea.vmem [#allocation2], %s158
        // Predicated region
        $region29: #{tpu_custom_call.1} parent=27 // pred_check
          %p160 = pneg %p54
        $region30: #{tpu_custom_call.1} parent=27 // pred_check_branch
          %162 = sbr.rel (%p160) target = $region32
        $region31: #{tpu_custom_call.1} parent=27 // pred_region
          %163 = dma.done %s156, 2048
        $region32: #{tpu_custom_call.1} parent=27 // pred_fallthru
          _
        %s164 = sand.u32 %s41, 1
        %s165 = scalar_lea.sflag [#allocation3], %s164
        %s166 = sand.u32 %s41, 1
        %s167 = smul.addr %s166, 128
        %s168 = scalar_lea.vmem [#allocation2], %s167
        %p169 = pneg %p54
        %p170 = pneg %p51
        %p171 = pneg %p75
        %p172 = pneg %p72
        %p173 = pneg %p103
        %p174 = pneg %p100
        %s175 = sand.u32 %s90, 1
        %s176 = scalar_lea.sflag [#allocation4], %s175
        %s177 = sand.u32 %s90, 1
        %s178 = smul.addr %s177, 8
        %s179 = scalar_lea.vmem [#allocation5], %s178
        %s180 = smul.u32 8, %s23
        %v181 = vld [vmem:[%s159] sm:$0x1]
        %v182 = vld [vmem:[%s159 + $0x10] sm:$0x1]
        %v183 = vld [vmem:[%s159 + $0x20] sm:$0x1]
        %v184 = vld [vmem:[%s159 + $0x30] sm:$0x1]
        %v185 = vld [vmem:[%s159 + $0x40] sm:$0x1]
        %v186 = vld [vmem:[%s159 + $0x50] sm:$0x1]
        %v187 = vld [vmem:[%s159 + $0x60] sm:$0x1]
        %v188 = vld [vmem:[%s159 + $0x70] sm:$0x1]
        %s189 = scalar_lea.vmem %s159, 8 [#allocation2]
        %v190 = vld [vmem:[%s189] sm:$0x1]
        %v191 = vld [vmem:[%s189 + $0x10] sm:$0x1]
        %v192 = vld [vmem:[%s189 + $0x20] sm:$0x1]
        %v193 = vld [vmem:[%s189 + $0x30] sm:$0x1]
        %v194 = vld [vmem:[%s189 + $0x40] sm:$0x1]
        %v195 = vld [vmem:[%s189 + $0x50] sm:$0x1]
        %v196 = vld [vmem:[%s189 + $0x60] sm:$0x1]
        %v197 = vld [vmem:[%s189 + $0x70] sm:$0x1]
        %v198 = vmax.f32 %v181, %v190
        %v199 = vmax.f32 %v182, %v191
        %v200 = vmax.f32 %v183, %v192
        %v201 = vmax.f32 %v184, %v193
        %v202 = vmax.f32 %v185, %v194
        %v203 = vmax.f32 %v186, %v195
        %v204 = vmax.f32 %v187, %v196
        %v205 = vmax.f32 %v188, %v197
        %v214 = vrot.slane %v199, 7
        %vm215 = vcmask 1041409
        %v216 = vsel %vm215, %v214, %v198
        %v217 = vrot.slane %v200, 6
        %vm218 = vcmask 1042434
        %v219 = vsel %vm218, %v217, %v216
        %v220 = vrot.slane %v201, 5
        %vm221 = vcmask 1043459
        %v222 = vsel %vm221, %v220, %v219
        %v223 = vrot.slane %v202, 4
        %vm224 = vcmask 1044484
        %v225 = vsel %vm224, %v223, %v222
        %v226 = vrot.slane %v203, 3
        %vm227 = vcmask 1045509
        %v228 = vsel %vm227, %v226, %v225
        %v229 = vrot.slane %v204, 2
        %vm230 = vcmask 1046534
        %v231 = vsel %vm230, %v229, %v228
        %v232 = vrot.slane %v205, 1
        %vm233 = vcmask 1047559
        %v234 = vsel %vm233, %v232, %v231
        %vm236 = vcmask 1048064
        %237 = vrot.lane.b32.xlu0 %v234, 64
        %v238 = vpop.permute.xlu0 %237
        %v239 = vsel %vm236, %v238, %v234
        %240 = vrot.lane.b32.xlu0 %v239, 64
        %v241 = vpop.permute.xlu0 %240
        %v242 = vsel %vm236, %v241, %v234
        %v244 = vrot.slane %v242, 1
        %v245 = vrot.slane %v242, 2
        %v246 = vrot.slane %v242, 3
        %v247 = vrot.slane %v242, 4
        %v248 = vrot.slane %v242, 5
        %v249 = vrot.slane %v242, 6
        %v250 = vrot.slane %v242, 7
        %251 = vrot.lane.b32.xlu0 %v242, 96
        %v252 = vpop.permute.xlu0 %251
        %253 = vrot.lane.b32.xlu0 %v244, 96
        %v254 = vpop.permute.xlu0 %253
        %255 = vrot.lane.b32.xlu0 %v245, 96
        %v256 = vpop.permute.xlu0 %255
        %257 = vrot.lane.b32.xlu0 %v246, 96
        %v258 = vpop.permute.xlu0 %257
        %259 = vrot.lane.b32.xlu0 %v247, 96
        %v260 = vpop.permute.xlu0 %259
        %261 = vrot.lane.b32.xlu0 %v248, 96
        %v262 = vpop.permute.xlu0 %261
        %263 = vrot.lane.b32.xlu0 %v249, 96
        %v264 = vpop.permute.xlu0 %263
        %265 = vrot.lane.b32.xlu0 %v250, 96
        %v266 = vpop.permute.xlu0 %265
        %v275 = vmax.f32 %v198, %v252
        %v276 = vmax.f32 %v199, %v254
        %v277 = vmax.f32 %v200, %v256
        %v278 = vmax.f32 %v201, %v258
        %v279 = vmax.f32 %v202, %v260
        %v280 = vmax.f32 %v203, %v262
        %v281 = vmax.f32 %v204, %v264
        %v282 = vmax.f32 %v205, %v266
        %v283 = vld [vmem:[%s1] sm:$0xff]
        %v284 = vld [vmem:[%s1 + $0x8] sm:$0xff]
        %v285 = vld [vmem:[%s1 + $0x10] sm:$0xff]
        %v286 = vld [vmem:[%s1 + $0x18] sm:$0xff]
        %v287 = vld [vmem:[%s1 + $0x20] sm:$0xff]
        %v288 = vld [vmem:[%s1 + $0x28] sm:$0xff]
        %v289 = vld [vmem:[%s1 + $0x30] sm:$0xff]
        %v290 = vld [vmem:[%s1 + $0x38] sm:$0xff]
        %v299 = vrot.slane %v276, 7
        %v300 = vsel %vm215, %v299, %v275
        %v301 = vrot.slane %v277, 6
        %v302 = vsel %vm218, %v301, %v300
        %v303 = vrot.slane %v278, 5
        %v304 = vsel %vm221, %v303, %v302
        %v305 = vrot.slane %v279, 4
        %v306 = vsel %vm224, %v305, %v304
        %v307 = vrot.slane %v280, 3
        %v308 = vsel %vm227, %v307, %v306
        %v309 = vrot.slane %v281, 2
        %v310 = vsel %vm230, %v309, %v308
        %v311 = vrot.slane %v282, 1
        %v312 = vsel %vm233, %v311, %v310
        %vm313 = vcmask 523264
        %v314 = vsel %vm313, %v312, 0
        %316 = vmatprep.subr.mxu0 0.0
        %317 = vmatpush1.msra.mxu0 0.0
        %318 = vmatprep.subr.mxu0 0.0
        %319 = vmatpush1.msra.mxu0 0.0
        %320 = vmatprep.subr.mxu0 0.0
        %321 = vmatpush1.msra.mxu0 0.0
        %322 = vmatprep.subr.mxu0 0.0
        %323 = vmatpush1.msra.mxu0 0.0
        %324 = vmatprep.subr.mxu0 0.0
        %325 = vmatpush1.msra.mxu0 0.0
        %326 = vmatprep.subr.mxu0 0.0
        %327 = vmatpush1.msra.mxu0 0.0
        %328 = vmatprep.subr.mxu0 0.0
        %329 = vmatpush1.msra.mxu0 0.0
        %330 = vmatprep.subr.mxu0 0.0
        %331 = vmatpush1.msra.mxu0 0.0
        %332 = vmatprep.subr.mxu0 0.0
        %333 = vmatpush1.msra.mxu0 %v290
        %334 = vmatprep.subr.mxu0 0.0
        %335 = vmatpush1.msra.mxu0 %v289
        %336 = vmatprep.subr.mxu0 0.0
        %337 = vmatpush1.msra.mxu0 %v288
        %338 = vmatprep.subr.mxu0 0.0
        %339 = vmatpush1.msra.mxu0 %v287
        %340 = vmatprep.subr.mxu0 0.0
        %341 = vmatpush1.msra.mxu0 %v286
        %342 = vmatprep.subr.mxu0 0.0
        %343 = vmatpush1.msra.mxu0 %v285
        %344 = vmatprep.subr.mxu0 0.0
        %345 = vmatpush1.msra.mxu0 %v284
        %346 = vmatprep.subr.mxu0 0.0
        %347 = vmatpush1.msra.mxu0 %v283
        %348 = vmatprep.subr.mxu0 0.0
        %349 = vmatpush2.msra.mxu0 0.0
        %350 = vmatprep.subr.mxu0 0.0
        %351 = vmatpush2.msra.mxu0 0.0
        %352 = vmatprep.subr.mxu0 0.0
        %353 = vmatpush2.msra.mxu0 0.0
        %354 = vmatprep.subr.mxu0 0.0
        %355 = vmatpush2.msra.mxu0 0.0
        %356 = vmatprep.subr.mxu0 0.0
        %357 = vmatpush2.msra.mxu0 0.0
        %358 = vmatprep.subr.mxu0 0.0
        %359 = vmatpush2.msra.mxu0 0.0
        %360 = vmatprep.subr.mxu0 0.0
        %361 = vmatpush2.msra.mxu0 0.0
        %362 = vmatprep.subr.mxu0 0.0
        %363 = vmatpush2.msra.mxu0 0.0
        %364 = vmatprep.subr.mxu0 0.0
        %365 = vmatpush2.msra.mxu0 0.0
        %366 = vmatprep.subr.mxu0 0.0
        %367 = vmatpush2.msra.mxu0 0.0
        %368 = vmatprep.subr.mxu0 0.0
        %369 = vmatpush2.msra.mxu0 0.0
        %370 = vmatprep.subr.mxu0 0.0
        %371 = vmatpush2.msra.mxu0 0.0
        %372 = vmatprep.subr.mxu0 0.0
        %373 = vmatpush2.msra.mxu0 0.0
        %374 = vmatprep.subr.mxu0 0.0
        %375 = vmatpush2.msra.mxu0 0.0
        %376 = vmatprep.subr.mxu0 0.0
        %377 = vmatpush2.msra.mxu0 0.0
        %378 = vmatprep.subr.mxu0 0.0
        %379 = vmatpush2.msra.mxu0 0.0
        %380 = vmatprep.mubr.f32.mxu0 0.0
        %381 = vmatmul.mubr.f32.gmra.mxu0 %v314
        %v382 = vpop.f32.mrf.mxu0
        %v383 = vadd.f32 0.0, %v382
        %v384 = vpop.f32.mrf.mxu0
        %385 = vdwg.mxu0
        %387 = vrot.lane.b32.xlu0 %v383, 112
        %v388 = vpop.permute.xlu0 %387
        %v390 = vmax.f32 %v383, %v388
        %vm391 = vcmask 130048
        %392 = vst.msk [vmem:[%s179] sm:$0xff] %vm391, %v390
        %v393 = vld [vmem:[%s159 + $0x1] sm:$0x1]
        %v394 = vld [vmem:[%s159 + $0x11] sm:$0x1]
        %v395 = vld [vmem:[%s159 + $0x21] sm:$0x1]
        %v396 = vld [vmem:[%s159 + $0x31] sm:$0x1]
        %v397 = vld [vmem:[%s159 + $0x41] sm:$0x1]
        %v398 = vld [vmem:[%s159 + $0x51] sm:$0x1]
        %v399 = vld [vmem:[%s159 + $0x61] sm:$0x1]
        %v400 = vld [vmem:[%s159 + $0x71] sm:$0x1]
        %v401 = vld [vmem:[%s189 + $0x1] sm:$0x1]
        %v402 = vld [vmem:[%s189 + $0x11] sm:$0x1]
        %v403 = vld [vmem:[%s189 + $0x21] sm:$0x1]
        %v404 = vld [vmem:[%s189 + $0x31] sm:$0x1]
        %v405 = vld [vmem:[%s189 + $0x41] sm:$0x1]
        %v406 = vld [vmem:[%s189 + $0x51] sm:$0x1]
        %v407 = vld [vmem:[%s189 + $0x61] sm:$0x1]
        %v408 = vld [vmem:[%s189 + $0x71] sm:$0x1]
        %v409 = vmax.f32 %v393, %v401
        %v410 = vmax.f32 %v394, %v402
        %v411 = vmax.f32 %v395, %v403
        %v412 = vmax.f32 %v396, %v404
        %v413 = vmax.f32 %v397, %v405
        %v414 = vmax.f32 %v398, %v406
        %v415 = vmax.f32 %v399, %v407
        %v416 = vmax.f32 %v400, %v408
        %v425 = vrot.slane %v410, 7
        %v426 = vsel %vm215, %v425, %v409
        %v427 = vrot.slane %v411, 6
        %v428 = vsel %vm218, %v427, %v426
        %v429 = vrot.slane %v412, 5
        %v430 = vsel %vm221, %v429, %v428
        %v431 = vrot.slane %v413, 4
        %v432 = vsel %vm224, %v431, %v430
        %v433 = vrot.slane %v414, 3
        %v434 = vsel %vm227, %v433, %v432
        %v435 = vrot.slane %v415, 2
        %v436 = vsel %vm230, %v435, %v434
        %v437 = vrot.slane %v416, 1
        %v438 = vsel %vm233, %v437, %v436
        %440 = vrot.lane.b32.xlu0 %v438, 64
        %v441 = vpop.permute.xlu0 %440
        %v442 = vsel %vm236, %v441, %v438
        %443 = vrot.lane.b32.xlu0 %v442, 64
        %v444 = vpop.permute.xlu0 %443
        %v445 = vsel %vm236, %v444, %v438
        %v447 = vrot.slane %v445, 1
        %v448 = vrot.slane %v445, 2
        %v449 = vrot.slane %v445, 3
        %v450 = vrot.slane %v445, 4
        %v451 = vrot.slane %v445, 5
        %v452 = vrot.slane %v445, 6
        %v453 = vrot.slane %v445, 7
        %454 = vrot.lane.b32.xlu0 %v445, 96
        %v455 = vpop.permute.xlu0 %454
        %456 = vrot.lane.b32.xlu0 %v447, 96
        %v457 = vpop.permute.xlu0 %456
        %458 = vrot.lane.b32.xlu0 %v448, 96
        %v459 = vpop.permute.xlu0 %458
        %460 = vrot.lane.b32.xlu0 %v449, 96
        %v461 = vpop.permute.xlu0 %460
        %462 = vrot.lane.b32.xlu0 %v450, 96
        %v463 = vpop.permute.xlu0 %462
        %464 = vrot.lane.b32.xlu0 %v451, 96
        %v465 = vpop.permute.xlu0 %464
        %466 = vrot.lane.b32.xlu0 %v452, 96
        %v467 = vpop.permute.xlu0 %466
        %468 = vrot.lane.b32.xlu0 %v453, 96
        %v469 = vpop.permute.xlu0 %468
        %v478 = vmax.f32 %v409, %v455
        %v479 = vmax.f32 %v410, %v457
        %v480 = vmax.f32 %v411, %v459
        %v481 = vmax.f32 %v412, %v461
        %v482 = vmax.f32 %v413, %v463
        %v483 = vmax.f32 %v414, %v465
        %v484 = vmax.f32 %v415, %v467
        %v485 = vmax.f32 %v416, %v469
        %v486 = vld [vmem:[%s1] sm:$0xff]
        %v487 = vld [vmem:[%s1 + $0x8] sm:$0xff]
        %v488 = vld [vmem:[%s1 + $0x10] sm:$0xff]
        %v489 = vld [vmem:[%s1 + $0x18] sm:$0xff]
        %v490 = vld [vmem:[%s1 + $0x20] sm:$0xff]
        %v491 = vld [vmem:[%s1 + $0x28] sm:$0xff]
        %v492 = vld [vmem:[%s1 + $0x30] sm:$0xff]
        %v493 = vld [vmem:[%s1 + $0x38] sm:$0xff]
        %v502 = vrot.slane %v479, 7
        %v503 = vsel %vm215, %v502, %v478
        %v504 = vrot.slane %v480, 6
        %v505 = vsel %vm218, %v504, %v503
        %v506 = vrot.slane %v481, 5
        %v507 = vsel %vm221, %v506, %v505
        %v508 = vrot.slane %v482, 4
        %v509 = vsel %vm224, %v508, %v507
        %v510 = vrot.slane %v483, 3
        %v511 = vsel %vm227, %v510, %v509
        %v512 = vrot.slane %v484, 2
        %v513 = vsel %vm230, %v512, %v511
        %v514 = vrot.slane %v485, 1
        %v515 = vsel %vm233, %v514, %v513
        %v516 = vsel %vm313, %v515, 0
        %518 = vmatprep.subr.mxu0 0.0
        %519 = vmatpush1.msra.mxu0 0.0
        %520 = vmatprep.subr.mxu0 0.0
        %521 = vmatpush1.msra.mxu0 0.0
        %522 = vmatprep.subr.mxu0 0.0
        %523 = vmatpush1.msra.mxu0 0.0
        %524 = vmatprep.subr.mxu0 0.0
        %525 = vmatpush1.msra.mxu0 0.0
        %526 = vmatprep.subr.mxu0 0.0
        %527 = vmatpush1.msra.mxu0 0.0
        %528 = vmatprep.subr.mxu0 0.0
        %529 = vmatpush1.msra.mxu0 0.0
        %530 = vmatprep.subr.mxu0 0.0
        %531 = vmatpush1.msra.mxu0 0.0
        %532 = vmatprep.subr.mxu0 0.0
        %533 = vmatpush1.msra.mxu0 0.0
        %534 = vmatprep.subr.mxu0 0.0
        %535 = vmatpush1.msra.mxu0 %v493
        %536 = vmatprep.subr.mxu0 0.0
        %537 = vmatpush1.msra.mxu0 %v492
        %538 = vmatprep.subr.mxu0 0.0
        %539 = vmatpush1.msra.mxu0 %v491
        %540 = vmatprep.subr.mxu0 0.0
        %541 = vmatpush1.msra.mxu0 %v490
        %542 = vmatprep.subr.mxu0 0.0
        %543 = vmatpush1.msra.mxu0 %v489
        %544 = vmatprep.subr.mxu0 0.0
        %545 = vmatpush1.msra.mxu0 %v488
        %546 = vmatprep.subr.mxu0 0.0
        %547 = vmatpush1.msra.mxu0 %v487
        %548 = vmatprep.subr.mxu0 0.0
        %549 = vmatpush1.msra.mxu0 %v486
        %550 = vmatprep.subr.mxu0 0.0
        %551 = vmatpush2.msra.mxu0 0.0
        %552 = vmatprep.subr.mxu0 0.0
        %553 = vmatpush2.msra.mxu0 0.0
        %554 = vmatprep.subr.mxu0 0.0
        %555 = vmatpush2.msra.mxu0 0.0
        %556 = vmatprep.subr.mxu0 0.0
        %557 = vmatpush2.msra.mxu0 0.0
        %558 = vmatprep.subr.mxu0 0.0
        %559 = vmatpush2.msra.mxu0 0.0
        %560 = vmatprep.subr.mxu0 0.0
        %561 = vmatpush2.msra.mxu0 0.0
        %562 = vmatprep.subr.mxu0 0.0
        %563 = vmatpush2.msra.mxu0 0.0
        %564 = vmatprep.subr.mxu0 0.0
        %565 = vmatpush2.msra.mxu0 0.0
        %566 = vmatprep.subr.mxu0 0.0
        %567 = vmatpush2.msra.mxu0 0.0
        %568 = vmatprep.subr.mxu0 0.0
        %569 = vmatpush2.msra.mxu0 0.0
        %570 = vmatprep.subr.mxu0 0.0
        %571 = vmatpush2.msra.mxu0 0.0
        %572 = vmatprep.subr.mxu0 0.0
        %573 = vmatpush2.msra.mxu0 0.0
        %574 = vmatprep.subr.mxu0 0.0
        %575 = vmatpush2.msra.mxu0 0.0
        %576 = vmatprep.subr.mxu0 0.0
        %577 = vmatpush2.msra.mxu0 0.0
        %578 = vmatprep.subr.mxu0 0.0
        %579 = vmatpush2.msra.mxu0 0.0
        %580 = vmatprep.subr.mxu0 0.0
        %581 = vmatpush2.msra.mxu0 0.0
        %582 = vmatprep.mubr.f32.mxu0 0.0
        %583 = vmatmul.mubr.f32.gmra.mxu0 %v516
        %v584 = vpop.f32.mrf.mxu0
        %v585 = vadd.f32 0.0, %v584
        %v586 = vpop.f32.mrf.mxu0
        %587 = vdwg.mxu0
        %589 = vrot.lane.b32.xlu0 %v585, 112
        %v590 = vpop.permute.xlu0 %589
        %v592 = vmax.f32 %v585, %v590
        %594 = vrot.lane.b32.xlu0 %v592, 16
        %v595 = vpop.permute.xlu0 %594
        %vm597 = vcmask 261248
        %598 = vst.msk [vmem:[%s179] sm:$0xff] %vm597, %v595
        %v599 = vld [vmem:[%s159 + $0x2] sm:$0x1]
        %v600 = vld [vmem:[%s159 + $0x12] sm:$0x1]
        %v601 = vld [vmem:[%s159 + $0x22] sm:$0x1]
        %v602 = vld [vmem:[%s159 + $0x32] sm:$0x1]
        %v603 = vld [vmem:[%s159 + $0x42] sm:$0x1]
        %v604 = vld [vmem:[%s159 + $0x52] sm:$0x1]
        %v605 = vld [vmem:[%s159 + $0x62] sm:$0x1]
        %v606 = vld [vmem:[%s159 + $0x72] sm:$0x1]
        %v607 = vld [vmem:[%s189 + $0x2] sm:$0x1]
        %v608 = vld [vmem:[%s189 + $0x12] sm:$0x1]
        %v609 = vld [vmem:[%s189 + $0x22] sm:$0x1]
        %v610 = vld [vmem:[%s189 + $0x32] sm:$0x1]
        %v611 = vld [vmem:[%s189 + $0x42] sm:$0x1]
        %v612 = vld [vmem:[%s189 + $0x52] sm:$0x1]
        %v613 = vld [vmem:[%s189 + $0x62] sm:$0x1]
        %v614 = vld [vmem:[%s189 + $0x72] sm:$0x1]
        %v615 = vmax.f32 %v599, %v607
        %v616 = vmax.f32 %v600, %v608
        %v617 = vmax.f32 %v601, %v609
        %v618 = vmax.f32 %v602, %v610
        %v619 = vmax.f32 %v603, %v611
        %v620 = vmax.f32 %v604, %v612
        %v621 = vmax.f32 %v605, %v613
        %v622 = vmax.f32 %v606, %v614
        %v631 = vrot.slane %v616, 7
        %v632 = vsel %vm215, %v631, %v615
        %v633 = vrot.slane %v617, 6
        %v634 = vsel %vm218, %v633, %v632
        %v635 = vrot.slane %v618, 5
        %v636 = vsel %vm221, %v635, %v634
        %v637 = vrot.slane %v619, 4
        %v638 = vsel %vm224, %v637, %v636
        %v639 = vrot.slane %v620, 3
        %v640 = vsel %vm227, %v639, %v638
        %v641 = vrot.slane %v621, 2
        %v642 = vsel %vm230, %v641, %v640
        %v643 = vrot.slane %v622, 1
        %v644 = vsel %vm233, %v643, %v642
        %646 = vrot.lane.b32.xlu0 %v644, 64
        %v647 = vpop.permute.xlu0 %646
        %v648 = vsel %vm236, %v647, %v644
        %649 = vrot.lane.b32.xlu0 %v648, 64
        %v650 = vpop.permute.xlu0 %649
        %v651 = vsel %vm236, %v650, %v644
        %v653 = vrot.slane %v651, 1
        %v654 = vrot.slane %v651, 2
        %v655 = vrot.slane %v651, 3
        %v656 = vrot.slane %v651, 4
        %v657 = vrot.slane %v651, 5
        %v658 = vrot.slane %v651, 6
        %v659 = vrot.slane %v651, 7
        %660 = vrot.lane.b32.xlu0 %v651, 96
        %v661 = vpop.permute.xlu0 %660
        %662 = vrot.lane.b32.xlu0 %v653, 96
        %v663 = vpop.permute.xlu0 %662
        %664 = vrot.lane.b32.xlu0 %v654, 96
        %v665 = vpop.permute.xlu0 %664
        %666 = vrot.lane.b32.xlu0 %v655, 96
        %v667 = vpop.permute.xlu0 %666
        %668 = vrot.lane.b32.xlu0 %v656, 96
        %v669 = vpop.permute.xlu0 %668
        %670 = vrot.lane.b32.xlu0 %v657, 96
        %v671 = vpop.permute.xlu0 %670
        %672 = vrot.lane.b32.xlu0 %v658, 96
        %v673 = vpop.permute.xlu0 %672
        %674 = vrot.lane.b32.xlu0 %v659, 96
        %v675 = vpop.permute.xlu0 %674
        %v684 = vmax.f32 %v615, %v661
        %v685 = vmax.f32 %v616, %v663
        %v686 = vmax.f32 %v617, %v665
        %v687 = vmax.f32 %v618, %v667
        %v688 = vmax.f32 %v619, %v669
        %v689 = vmax.f32 %v620, %v671
        %v690 = vmax.f32 %v621, %v673
        %v691 = vmax.f32 %v622, %v675
        %v692 = vld [vmem:[%s1] sm:$0xff]
        %v693 = vld [vmem:[%s1 + $0x8] sm:$0xff]
        %v694 = vld [vmem:[%s1 + $0x10] sm:$0xff]
        %v695 = vld [vmem:[%s1 + $0x18] sm:$0xff]
        %v696 = vld [vmem:[%s1 + $0x20] sm:$0xff]
        %v697 = vld [vmem:[%s1 + $0x28] sm:$0xff]
        %v698 = vld [vmem:[%s1 + $0x30] sm:$0xff]
        %v699 = vld [vmem:[%s1 + $0x38] sm:$0xff]
        %v708 = vrot.slane %v685, 7
        %v709 = vsel %vm215, %v708, %v684
        %v710 = vrot.slane %v686, 6
        %v711 = vsel %vm218, %v710, %v709
        %v712 = vrot.slane %v687, 5
        %v713 = vsel %vm221, %v712, %v711
        %v714 = vrot.slane %v688, 4
        %v715 = vsel %vm224, %v714, %v713
        %v716 = vrot.slane %v689, 3
        %v717 = vsel %vm227, %v716, %v715
        %v718 = vrot.slane %v690, 2
        %v719 = vsel %vm230, %v718, %v717
        %v720 = vrot.slane %v691, 1
        %v721 = vsel %vm233, %v720, %v719
        %v722 = vsel %vm313, %v721, 0
        %724 = vmatprep.subr.mxu0 0.0
        %725 = vmatpush1.msra.mxu0 0.0
        %726 = vmatprep.subr.mxu0 0.0
        %727 = vmatpush1.msra.mxu0 0.0
        %728 = vmatprep.subr.mxu0 0.0
        %729 = vmatpush1.msra.mxu0 0.0
        %730 = vmatprep.subr.mxu0 0.0
        %731 = vmatpush1.msra.mxu0 0.0
        %732 = vmatprep.subr.mxu0 0.0
        %733 = vmatpush1.msra.mxu0 0.0
        %734 = vmatprep.subr.mxu0 0.0
        %735 = vmatpush1.msra.mxu0 0.0
        %736 = vmatprep.subr.mxu0 0.0
        %737 = vmatpush1.msra.mxu0 0.0
        %738 = vmatprep.subr.mxu0 0.0
        %739 = vmatpush1.msra.mxu0 0.0
        %740 = vmatprep.subr.mxu0 0.0
        %741 = vmatpush1.msra.mxu0 %v699
        %742 = vmatprep.subr.mxu0 0.0
        %743 = vmatpush1.msra.mxu0 %v698
        %744 = vmatprep.subr.mxu0 0.0
        %745 = vmatpush1.msra.mxu0 %v697
        %746 = vmatprep.subr.mxu0 0.0
        %747 = vmatpush1.msra.mxu0 %v696
        %748 = vmatprep.subr.mxu0 0.0
        %749 = vmatpush1.msra.mxu0 %v695
        %750 = vmatprep.subr.mxu0 0.0
        %751 = vmatpush1.msra.mxu0 %v694
        %752 = vmatprep.subr.mxu0 0.0
        %753 = vmatpush1.msra.mxu0 %v693
        %754 = vmatprep.subr.mxu0 0.0
        %755 = vmatpush1.msra.mxu0 %v692
        %756 = vmatprep.subr.mxu0 0.0
        %757 = vmatpush2.msra.mxu0 0.0
        %758 = vmatprep.subr.mxu0 0.0
        %759 = vmatpush2.msra.mxu0 0.0
        %760 = vmatprep.subr.mxu0 0.0
        %761 = vmatpush2.msra.mxu0 0.0
        %762 = vmatprep.subr.mxu0 0.0
        %763 = vmatpush2.msra.mxu0 0.0
        %764 = vmatprep.subr.mxu0 0.0
        %765 = vmatpush2.msra.mxu0 0.0
        %766 = vmatprep.subr.mxu0 0.0
        %767 = vmatpush2.msra.mxu0 0.0
        %768 = vmatprep.subr.mxu0 0.0
        %769 = vmatpush2.msra.mxu0 0.0
        %770 = vmatprep.subr.mxu0 0.0
        %771 = vmatpush2.msra.mxu0 0.0
        %772 = vmatprep.subr.mxu0 0.0
        %773 = vmatpush2.msra.mxu0 0.0
        %774 = vmatprep.subr.mxu0 0.0
        %775 = vmatpush2.msra.mxu0 0.0
        %776 = vmatprep.subr.mxu0 0.0
        %777 = vmatpush2.msra.mxu0 0.0
        %778 = vmatprep.subr.mxu0 0.0
        %779 = vmatpush2.msra.mxu0 0.0
        %780 = vmatprep.subr.mxu0 0.0
        %781 = vmatpush2.msra.mxu0 0.0
        %782 = vmatprep.subr.mxu0 0.0
        %783 = vmatpush2.msra.mxu0 0.0
        %784 = vmatprep.subr.mxu0 0.0
        %785 = vmatpush2.msra.mxu0 0.0
        %786 = vmatprep.subr.mxu0 0.0
        %787 = vmatpush2.msra.mxu0 0.0
        %788 = vmatprep.mubr.f32.mxu0 0.0
        %789 = vmatmul.mubr.f32.gmra.mxu0 %v722
        %v790 = vpop.f32.mrf.mxu0
        %v791 = vadd.f32 0.0, %v790
        %v792 = vpop.f32.mrf.mxu0
        %793 = vdwg.mxu0
        %795 = vrot.lane.b32.xlu0 %v791, 112
        %v796 = vpop.permute.xlu0 %795
        %v798 = vmax.f32 %v791, %v796
        %800 = vrot.lane.b32.xlu0 %v798, 32
        %v801 = vpop.permute.xlu0 %800
        %vm803 = vcmask 392448
        %804 = vst.msk [vmem:[%s179] sm:$0xff] %vm803, %v801
        %v805 = vld [vmem:[%s159 + $0x3] sm:$0x1]
        %v806 = vld [vmem:[%s159 + $0x13] sm:$0x1]
        %v807 = vld [vmem:[%s159 + $0x23] sm:$0x1]
        %v808 = vld [vmem:[%s159 + $0x33] sm:$0x1]
        %v809 = vld [vmem:[%s159 + $0x43] sm:$0x1]
        %v810 = vld [vmem:[%s159 + $0x53] sm:$0x1]
        %v811 = vld [vmem:[%s159 + $0x63] sm:$0x1]
        %v812 = vld [vmem:[%s159 + $0x73] sm:$0x1]
        %v813 = vld [vmem:[%s189 + $0x3] sm:$0x1]
        %v814 = vld [vmem:[%s189 + $0x13] sm:$0x1]
        %v815 = vld [vmem:[%s189 + $0x23] sm:$0x1]
        %v816 = vld [vmem:[%s189 + $0x33] sm:$0x1]
        %v817 = vld [vmem:[%s189 + $0x43] sm:$0x1]
        %v818 = vld [vmem:[%s189 + $0x53] sm:$0x1]
        %v819 = vld [vmem:[%s189 + $0x63] sm:$0x1]
        %v820 = vld [vmem:[%s189 + $0x73] sm:$0x1]
        %v821 = vmax.f32 %v805, %v813
        %v822 = vmax.f32 %v806, %v814
        %v823 = vmax.f32 %v807, %v815
        %v824 = vmax.f32 %v808, %v816
        %v825 = vmax.f32 %v809, %v817
        %v826 = vmax.f32 %v810, %v818
        %v827 = vmax.f32 %v811, %v819
        %v828 = vmax.f32 %v812, %v820
        %v837 = vrot.slane %v822, 7
        %v838 = vsel %vm215, %v837, %v821
        %v839 = vrot.slane %v823, 6
        %v840 = vsel %vm218, %v839, %v838
        %v841 = vrot.slane %v824, 5
        %v842 = vsel %vm221, %v841, %v840
        %v843 = vrot.slane %v825, 4
        %v844 = vsel %vm224, %v843, %v842
        %v845 = vrot.slane %v826, 3
        %v846 = vsel %vm227, %v845, %v844
        %v847 = vrot.slane %v827, 2
        %v848 = vsel %vm230, %v847, %v846
        %v849 = vrot.slane %v828, 1
        %v850 = vsel %vm233, %v849, %v848
        %852 = vrot.lane.b32.xlu0 %v850, 64
        %v853 = vpop.permute.xlu0 %852
        %v854 = vsel %vm236, %v853, %v850
        %855 = vrot.lane.b32.xlu0 %v854, 64
        %v856 = vpop.permute.xlu0 %855
        %v857 = vsel %vm236, %v856, %v850
        %v859 = vrot.slane %v857, 1
        %v860 = vrot.slane %v857, 2
        %v861 = vrot.slane %v857, 3
        %v862 = vrot.slane %v857, 4
        %v863 = vrot.slane %v857, 5
        %v864 = vrot.slane %v857, 6
        %v865 = vrot.slane %v857, 7
        %866 = vrot.lane.b32.xlu0 %v857, 96
        %v867 = vpop.permute.xlu0 %866
        %868 = vrot.lane.b32.xlu0 %v859, 96
        %v869 = vpop.permute.xlu0 %868
        %870 = vrot.lane.b32.xlu0 %v860, 96
        %v871 = vpop.permute.xlu0 %870
        %872 = vrot.lane.b32.xlu0 %v861, 96
        %v873 = vpop.permute.xlu0 %872
        %874 = vrot.lane.b32.xlu0 %v862, 96
        %v875 = vpop.permute.xlu0 %874
        %876 = vrot.lane.b32.xlu0 %v863, 96
        %v877 = vpop.permute.xlu0 %876
        %878 = vrot.lane.b32.xlu0 %v864, 96
        %v879 = vpop.permute.xlu0 %878
        %880 = vrot.lane.b32.xlu0 %v865, 96
        %v881 = vpop.permute.xlu0 %880
        %v890 = vmax.f32 %v821, %v867
        %v891 = vmax.f32 %v822, %v869
        %v892 = vmax.f32 %v823, %v871
        %v893 = vmax.f32 %v824, %v873
        %v894 = vmax.f32 %v825, %v875
        %v895 = vmax.f32 %v826, %v877
        %v896 = vmax.f32 %v827, %v879
        %v897 = vmax.f32 %v828, %v881
        %v898 = vld [vmem:[%s1] sm:$0xff]
        %v899 = vld [vmem:[%s1 + $0x8] sm:$0xff]
        %v900 = vld [vmem:[%s1 + $0x10] sm:$0xff]
        %v901 = vld [vmem:[%s1 + $0x18] sm:$0xff]
        %v902 = vld [vmem:[%s1 + $0x20] sm:$0xff]
        %v903 = vld [vmem:[%s1 + $0x28] sm:$0xff]
        %v904 = vld [vmem:[%s1 + $0x30] sm:$0xff]
        %v905 = vld [vmem:[%s1 + $0x38] sm:$0xff]
        %v914 = vrot.slane %v891, 7
        %v915 = vsel %vm215, %v914, %v890
        %v916 = vrot.slane %v892, 6
        %v917 = vsel %vm218, %v916, %v915
        %v918 = vrot.slane %v893, 5
        %v919 = vsel %vm221, %v918, %v917
        %v920 = vrot.slane %v894, 4
        %v921 = vsel %vm224, %v920, %v919
        %v922 = vrot.slane %v895, 3
        %v923 = vsel %vm227, %v922, %v921
        %v924 = vrot.slane %v896, 2
        %v925 = vsel %vm230, %v924, %v923
        %v926 = vrot.slane %v897, 1
        %v927 = vsel %vm233, %v926, %v925
        %v928 = vsel %vm313, %v927, 0
        %930 = vmatprep.subr.mxu0 0.0
        %931 = vmatpush1.msra.mxu0 0.0
        %932 = vmatprep.subr.mxu0 0.0
        %933 = vmatpush1.msra.mxu0 0.0
        %934 = vmatprep.subr.mxu0 0.0
        %935 = vmatpush1.msra.mxu0 0.0
        %936 = vmatprep.subr.mxu0 0.0
        %937 = vmatpush1.msra.mxu0 0.0
        %938 = vmatprep.subr.mxu0 0.0
        %939 = vmatpush1.msra.mxu0 0.0
        %940 = vmatprep.subr.mxu0 0.0
        %941 = vmatpush1.msra.mxu0 0.0
        %942 = vmatprep.subr.mxu0 0.0
        %943 = vmatpush1.msra.mxu0 0.0
        %944 = vmatprep.subr.mxu0 0.0
        %945 = vmatpush1.msra.mxu0 0.0
        %946 = vmatprep.subr.mxu0 0.0
        %947 = vmatpush1.msra.mxu0 %v905
        %948 = vmatprep.subr.mxu0 0.0
        %949 = vmatpush1.msra.mxu0 %v904
        %950 = vmatprep.subr.mxu0 0.0
        %951 = vmatpush1.msra.mxu0 %v903
        %952 = vmatprep.subr.mxu0 0.0
        %953 = vmatpush1.msra.mxu0 %v902
        %954 = vmatprep.subr.mxu0 0.0
        %955 = vmatpush1.msra.mxu0 %v901
        %956 = vmatprep.subr.mxu0 0.0
        %957 = vmatpush1.msra.mxu0 %v900
        %958 = vmatprep.subr.mxu0 0.0
        %959 = vmatpush1.msra.mxu0 %v899
        %960 = vmatprep.subr.mxu0 0.0
        %961 = vmatpush1.msra.mxu0 %v898
        %962 = vmatprep.subr.mxu0 0.0
        %963 = vmatpush2.msra.mxu0 0.0
        %964 = vmatprep.subr.mxu0 0.0
        %965 = vmatpush2.msra.mxu0 0.0
        %966 = vmatprep.subr.mxu0 0.0
        %967 = vmatpush2.msra.mxu0 0.0
        %968 = vmatprep.subr.mxu0 0.0
        %969 = vmatpush2.msra.mxu0 0.0
        %970 = vmatprep.subr.mxu0 0.0
        %971 = vmatpush2.msra.mxu0 0.0
        %972 = vmatprep.subr.mxu0 0.0
        %973 = vmatpush2.msra.mxu0 0.0
        %974 = vmatprep.subr.mxu0 0.0
        %975 = vmatpush2.msra.mxu0 0.0
        %976 = vmatprep.subr.mxu0 0.0
        %977 = vmatpush2.msra.mxu0 0.0
        %978 = vmatprep.subr.mxu0 0.0
        %979 = vmatpush2.msra.mxu0 0.0
        %980 = vmatprep.subr.mxu0 0.0
        %981 = vmatpush2.msra.mxu0 0.0
        %982 = vmatprep.subr.mxu0 0.0
        %983 = vmatpush2.msra.mxu0 0.0
        %984 = vmatprep.subr.mxu0 0.0
        %985 = vmatpush2.msra.mxu0 0.0
        %986 = vmatprep.subr.mxu0 0.0
        %987 = vmatpush2.msra.mxu0 0.0
        %988 = vmatprep.subr.mxu0 0.0
        %989 = vmatpush2.msra.mxu0 0.0
        %990 = vmatprep.subr.mxu0 0.0
        %991 = vmatpush2.msra.mxu0 0.0
        %992 = vmatprep.subr.mxu0 0.0
        %993 = vmatpush2.msra.mxu0 0.0
        %994 = vmatprep.mubr.f32.mxu0 0.0
        %995 = vmatmul.mubr.f32.gmra.mxu0 %v928
        %v996 = vpop.f32.mrf.mxu0
        %v997 = vadd.f32 0.0, %v996
        %v998 = vpop.f32.mrf.mxu0
        %999 = vdwg.mxu0
        %1001 = vrot.lane.b32.xlu0 %v997, 112
        %v1002 = vpop.permute.xlu0 %1001
        %v1004 = vmax.f32 %v997, %v1002
        %1006 = vrot.lane.b32.xlu0 %v1004, 48
        %v1007 = vpop.permute.xlu0 %1006
        %vm1009 = vcmask 523648
        %1010 = vst.msk [vmem:[%s179] sm:$0xff] %vm1009, %v1007
        %v1011 = vld [vmem:[%s159 + $0x4] sm:$0x1]
        %v1012 = vld [vmem:[%s159 + $0x14] sm:$0x1]
        %v1013 = vld [vmem:[%s159 + $0x24] sm:$0x1]
        %v1014 = vld [vmem:[%s159 + $0x34] sm:$0x1]
        %v1015 = vld [vmem:[%s159 + $0x44] sm:$0x1]
        %v1016 = vld [vmem:[%s159 + $0x54] sm:$0x1]
        %v1017 = vld [vmem:[%s159 + $0x64] sm:$0x1]
        %v1018 = vld [vmem:[%s159 + $0x74] sm:$0x1]
        %v1019 = vld [vmem:[%s189 + $0x4] sm:$0x1]
        %v1020 = vld [vmem:[%s189 + $0x14] sm:$0x1]
        %v1021 = vld [vmem:[%s189 + $0x24] sm:$0x1]
        %v1022 = vld [vmem:[%s189 + $0x34] sm:$0x1]
        %v1023 = vld [vmem:[%s189 + $0x44] sm:$0x1]
        %v1024 = vld [vmem:[%s189 + $0x54] sm:$0x1]
        %v1025 = vld [vmem:[%s189 + $0x64] sm:$0x1]
        %v1026 = vld [vmem:[%s189 + $0x74] sm:$0x1]
        %v1027 = vmax.f32 %v1011, %v1019
        %v1028 = vmax.f32 %v1012, %v1020
        %v1029 = vmax.f32 %v1013, %v1021
        %v1030 = vmax.f32 %v1014, %v1022
        %v1031 = vmax.f32 %v1015, %v1023
        %v1032 = vmax.f32 %v1016, %v1024
        %v1033 = vmax.f32 %v1017, %v1025
        %v1034 = vmax.f32 %v1018, %v1026
        %v1043 = vrot.slane %v1028, 7
        %v1044 = vsel %vm215, %v1043, %v1027
        %v1045 = vrot.slane %v1029, 6
        %v1046 = vsel %vm218, %v1045, %v1044
        %v1047 = vrot.slane %v1030, 5
        %v1048 = vsel %vm221, %v1047, %v1046
        %v1049 = vrot.slane %v1031, 4
        %v1050 = vsel %vm224, %v1049, %v1048
        %v1051 = vrot.slane %v1032, 3
        %v1052 = vsel %vm227, %v1051, %v1050
        %v1053 = vrot.slane %v1033, 2
        %v1054 = vsel %vm230, %v1053, %v1052
        %v1055 = vrot.slane %v1034, 1
        %v1056 = vsel %vm233, %v1055, %v1054
        %1058 = vrot.lane.b32.xlu0 %v1056, 64
        %v1059 = vpop.permute.xlu0 %1058
        %v1060 = vsel %vm236, %v1059, %v1056
        %1061 = vrot.lane.b32.xlu0 %v1060, 64
        %v1062 = vpop.permute.xlu0 %1061
        %v1063 = vsel %vm236, %v1062, %v1056
        %v1065 = vrot.slane %v1063, 1
        %v1066 = vrot.slane %v1063, 2
        %v1067 = vrot.slane %v1063, 3
        %v1068 = vrot.slane %v1063, 4
        %v1069 = vrot.slane %v1063, 5
        %v1070 = vrot.slane %v1063, 6
        %v1071 = vrot.slane %v1063, 7
        %1072 = vrot.lane.b32.xlu0 %v1063, 96
        %v1073 = vpop.permute.xlu0 %1072
        %1074 = vrot.lane.b32.xlu0 %v1065, 96
        %v1075 = vpop.permute.xlu0 %1074
        %1076 = vrot.lane.b32.xlu0 %v1066, 96
        %v1077 = vpop.permute.xlu0 %1076
        %1078 = vrot.lane.b32.xlu0 %v1067, 96
        %v1079 = vpop.permute.xlu0 %1078
        %1080 = vrot.lane.b32.xlu0 %v1068, 96
        %v1081 = vpop.permute.xlu0 %1080
        %1082 = vrot.lane.b32.xlu0 %v1069, 96
        %v1083 = vpop.permute.xlu0 %1082
        %1084 = vrot.lane.b32.xlu0 %v1070, 96
        %v1085 = vpop.permute.xlu0 %1084
        %1086 = vrot.lane.b32.xlu0 %v1071, 96
        %v1087 = vpop.permute.xlu0 %1086
        %v1096 = vmax.f32 %v1027, %v1073
        %v1097 = vmax.f32 %v1028, %v1075
        %v1098 = vmax.f32 %v1029, %v1077
        %v1099 = vmax.f32 %v1030, %v1079
        %v1100 = vmax.f32 %v1031, %v1081
        %v1101 = vmax.f32 %v1032, %v1083
        %v1102 = vmax.f32 %v1033, %v1085
        %v1103 = vmax.f32 %v1034, %v1087
        %v1104 = vld [vmem:[%s1] sm:$0xff]
        %v1105 = vld [vmem:[%s1 + $0x8] sm:$0xff]
        %v1106 = vld [vmem:[%s1 + $0x10] sm:$0xff]
        %v1107 = vld [vmem:[%s1 + $0x18] sm:$0xff]
        %v1108 = vld [vmem:[%s1 + $0x20] sm:$0xff]
        %v1109 = vld [vmem:[%s1 + $0x28] sm:$0xff]
        %v1110 = vld [vmem:[%s1 + $0x30] sm:$0xff]
        %v1111 = vld [vmem:[%s1 + $0x38] sm:$0xff]
        %v1120 = vrot.slane %v1097, 7
        %v1121 = vsel %vm215, %v1120, %v1096
        %v1122 = vrot.slane %v1098, 6
        %v1123 = vsel %vm218, %v1122, %v1121
        %v1124 = vrot.slane %v1099, 5
        %v1125 = vsel %vm221, %v1124, %v1123
        %v1126 = vrot.slane %v1100, 4
        %v1127 = vsel %vm224, %v1126, %v1125
        %v1128 = vrot.slane %v1101, 3
        %v1129 = vsel %vm227, %v1128, %v1127
        %v1130 = vrot.slane %v1102, 2
        %v1131 = vsel %vm230, %v1130, %v1129
        %v1132 = vrot.slane %v1103, 1
        %v1133 = vsel %vm233, %v1132, %v1131
        %v1134 = vsel %vm313, %v1133, 0
        %1136 = vmatprep.subr.mxu0 0.0
        %1137 = vmatpush1.msra.mxu0 0.0
        %1138 = vmatprep.subr.mxu0 0.0
        %1139 = vmatpush1.msra.mxu0 0.0
        %1140 = vmatprep.subr.mxu0 0.0
        %1141 = vmatpush1.msra.mxu0 0.0
        %1142 = vmatprep.subr.mxu0 0.0
        %1143 = vmatpush1.msra.mxu0 0.0
        %1144 = vmatprep.subr.mxu0 0.0
        %1145 = vmatpush1.msra.mxu0 0.0
        %1146 = vmatprep.subr.mxu0 0.0
        %1147 = vmatpush1.msra.mxu0 0.0
        %1148 = vmatprep.subr.mxu0 0.0
        %1149 = vmatpush1.msra.mxu0 0.0
        %1150 = vmatprep.subr.mxu0 0.0
        %1151 = vmatpush1.msra.mxu0 0.0
        %1152 = vmatprep.subr.mxu0 0.0
        %1153 = vmatpush1.msra.mxu0 %v1111
        %1154 = vmatprep.subr.mxu0 0.0
        %1155 = vmatpush1.msra.mxu0 %v1110
        %1156 = vmatprep.subr.mxu0 0.0
        %1157 = vmatpush1.msra.mxu0 %v1109
        %1158 = vmatprep.subr.mxu0 0.0
        %1159 = vmatpush1.msra.mxu0 %v1108
        %1160 = vmatprep.subr.mxu0 0.0
        %1161 = vmatpush1.msra.mxu0 %v1107
        %1162 = vmatprep.subr.mxu0 0.0
        %1163 = vmatpush1.msra.mxu0 %v1106
        %1164 = vmatprep.subr.mxu0 0.0
        %1165 = vmatpush1.msra.mxu0 %v1105
        %1166 = vmatprep.subr.mxu0 0.0
        %1167 = vmatpush1.msra.mxu0 %v1104
        %1168 = vmatprep.subr.mxu0 0.0
        %1169 = vmatpush2.msra.mxu0 0.0
        %1170 = vmatprep.subr.mxu0 0.0
        %1171 = vmatpush2.msra.mxu0 0.0
        %1172 = vmatprep.subr.mxu0 0.0
        %1173 = vmatpush2.msra.mxu0 0.0
        %1174 = vmatprep.subr.mxu0 0.0
        %1175 = vmatpush2.msra.mxu0 0.0
        %1176 = vmatprep.subr.mxu0 0.0
        %1177 = vmatpush2.msra.mxu0 0.0
        %1178 = vmatprep.subr.mxu0 0.0
        %1179 = vmatpush2.msra.mxu0 0.0
        %1180 = vmatprep.subr.mxu0 0.0
        %1181 = vmatpush2.msra.mxu0 0.0
        %1182 = vmatprep.subr.mxu0 0.0
        %1183 = vmatpush2.msra.mxu0 0.0
        %1184 = vmatprep.subr.mxu0 0.0
        %1185 = vmatpush2.msra.mxu0 0.0
        %1186 = vmatprep.subr.mxu0 0.0
        %1187 = vmatpush2.msra.mxu0 0.0
        %1188 = vmatprep.subr.mxu0 0.0
        %1189 = vmatpush2.msra.mxu0 0.0
        %1190 = vmatprep.subr.mxu0 0.0
        %1191 = vmatpush2.msra.mxu0 0.0
        %1192 = vmatprep.subr.mxu0 0.0
        %1193 = vmatpush2.msra.mxu0 0.0
        %1194 = vmatprep.subr.mxu0 0.0
        %1195 = vmatpush2.msra.mxu0 0.0
        %1196 = vmatprep.subr.mxu0 0.0
        %1197 = vmatpush2.msra.mxu0 0.0
        %1198 = vmatprep.subr.mxu0 0.0
        %1199 = vmatpush2.msra.mxu0 0.0
        %1200 = vmatprep.mubr.f32.mxu0 0.0
        %1201 = vmatmul.mubr.f32.gmra.mxu0 %v1134
        %v1202 = vpop.f32.mrf.mxu0
        %v1203 = vadd.f32 0.0, %v1202
        %v1204 = vpop.f32.mrf.mxu0
        %1205 = vdwg.mxu0
        %1207 = vrot.lane.b32.xlu0 %v1203, 112
        %v1208 = vpop.permute.xlu0 %1207
        %v1210 = vmax.f32 %v1203, %v1208
        %1212 = vrot.lane.b32.xlu0 %v1210, 64
        %v1213 = vpop.permute.xlu0 %1212
        %vm1215 = vcmask 654848
        %1216 = vst.msk [vmem:[%s179] sm:$0xff] %vm1215, %v1213
        %v1217 = vld [vmem:[%s159 + $0x5] sm:$0x1]
        %v1218 = vld [vmem:[%s159 + $0x15] sm:$0x1]
        %v1219 = vld [vmem:[%s159 + $0x25] sm:$0x1]
        %v1220 = vld [vmem:[%s159 + $0x35] sm:$0x1]
        %v1221 = vld [vmem:[%s159 + $0x45] sm:$0x1]
        %v1222 = vld [vmem:[%s159 + $0x55] sm:$0x1]
        %v1223 = vld [vmem:[%s159 + $0x65] sm:$0x1]
        %v1224 = vld [vmem:[%s159 + $0x75] sm:$0x1]
        %v1225 = vld [vmem:[%s189 + $0x5] sm:$0x1]
        %v1226 = vld [vmem:[%s189 + $0x15] sm:$0x1]
        %v1227 = vld [vmem:[%s189 + $0x25] sm:$0x1]
        %v1228 = vld [vmem:[%s189 + $0x35] sm:$0x1]
        %v1229 = vld [vmem:[%s189 + $0x45] sm:$0x1]
        %v1230 = vld [vmem:[%s189 + $0x55] sm:$0x1]
        %v1231 = vld [vmem:[%s189 + $0x65] sm:$0x1]
        %v1232 = vld [vmem:[%s189 + $0x75] sm:$0x1]
        %v1233 = vmax.f32 %v1217, %v1225
        %v1234 = vmax.f32 %v1218, %v1226
        %v1235 = vmax.f32 %v1219, %v1227
        %v1236 = vmax.f32 %v1220, %v1228
        %v1237 = vmax.f32 %v1221, %v1229
        %v1238 = vmax.f32 %v1222, %v1230
        %v1239 = vmax.f32 %v1223, %v1231
        %v1240 = vmax.f32 %v1224, %v1232
        %v1249 = vrot.slane %v1234, 7
        %v1250 = vsel %vm215, %v1249, %v1233
        %v1251 = vrot.slane %v1235, 6
        %v1252 = vsel %vm218, %v1251, %v1250
        %v1253 = vrot.slane %v1236, 5
        %v1254 = vsel %vm221, %v1253, %v1252
        %v1255 = vrot.slane %v1237, 4
        %v1256 = vsel %vm224, %v1255, %v1254
        %v1257 = vrot.slane %v1238, 3
        %v1258 = vsel %vm227, %v1257, %v1256
        %v1259 = vrot.slane %v1239, 2
        %v1260 = vsel %vm230, %v1259, %v1258
        %v1261 = vrot.slane %v1240, 1
        %v1262 = vsel %vm233, %v1261, %v1260
        %1264 = vrot.lane.b32.xlu0 %v1262, 64
        %v1265 = vpop.permute.xlu0 %1264
        %v1266 = vsel %vm236, %v1265, %v1262
        %1267 = vrot.lane.b32.xlu0 %v1266, 64
        %v1268 = vpop.permute.xlu0 %1267
        %v1269 = vsel %vm236, %v1268, %v1262
        %v1271 = vrot.slane %v1269, 1
        %v1272 = vrot.slane %v1269, 2
        %v1273 = vrot.slane %v1269, 3
        %v1274 = vrot.slane %v1269, 4
        %v1275 = vrot.slane %v1269, 5
        %v1276 = vrot.slane %v1269, 6
        %v1277 = vrot.slane %v1269, 7
        %1278 = vrot.lane.b32.xlu0 %v1269, 96
        %v1279 = vpop.permute.xlu0 %1278
        %1280 = vrot.lane.b32.xlu0 %v1271, 96
        %v1281 = vpop.permute.xlu0 %1280
        %1282 = vrot.lane.b32.xlu0 %v1272, 96
        %v1283 = vpop.permute.xlu0 %1282
        %1284 = vrot.lane.b32.xlu0 %v1273, 96
        %v1285 = vpop.permute.xlu0 %1284
        %1286 = vrot.lane.b32.xlu0 %v1274, 96
        %v1287 = vpop.permute.xlu0 %1286
        %1288 = vrot.lane.b32.xlu0 %v1275, 96
        %v1289 = vpop.permute.xlu0 %1288
        %1290 = vrot.lane.b32.xlu0 %v1276, 96
        %v1291 = vpop.permute.xlu0 %1290
        %1292 = vrot.lane.b32.xlu0 %v1277, 96
        %v1293 = vpop.permute.xlu0 %1292
        %v1302 = vmax.f32 %v1233, %v1279
        %v1303 = vmax.f32 %v1234, %v1281
        %v1304 = vmax.f32 %v1235, %v1283
        %v1305 = vmax.f32 %v1236, %v1285
        %v1306 = vmax.f32 %v1237, %v1287
        %v1307 = vmax.f32 %v1238, %v1289
        %v1308 = vmax.f32 %v1239, %v1291
        %v1309 = vmax.f32 %v1240, %v1293
        %v1310 = vld [vmem:[%s1] sm:$0xff]
        %v1311 = vld [vmem:[%s1 + $0x8] sm:$0xff]
        %v1312 = vld [vmem:[%s1 + $0x10] sm:$0xff]
        %v1313 = vld [vmem:[%s1 + $0x18] sm:$0xff]
        %v1314 = vld [vmem:[%s1 + $0x20] sm:$0xff]
        %v1315 = vld [vmem:[%s1 + $0x28] sm:$0xff]
        %v1316 = vld [vmem:[%s1 + $0x30] sm:$0xff]
        %v1317 = vld [vmem:[%s1 + $0x38] sm:$0xff]
        %v1326 = vrot.slane %v1303, 7
        %v1327 = vsel %vm215, %v1326, %v1302
        %v1328 = vrot.slane %v1304, 6
        %v1329 = vsel %vm218, %v1328, %v1327
        %v1330 = vrot.slane %v1305, 5
        %v1331 = vsel %vm221, %v1330, %v1329
        %v1332 = vrot.slane %v1306, 4
        %v1333 = vsel %vm224, %v1332, %v1331
        %v1334 = vrot.slane %v1307, 3
        %v1335 = vsel %vm227, %v1334, %v1333
        %v1336 = vrot.slane %v1308, 2
        %v1337 = vsel %vm230, %v1336, %v1335
        %v1338 = vrot.slane %v1309, 1
        %v1339 = vsel %vm233, %v1338, %v1337
        %v1340 = vsel %vm313, %v1339, 0
        %1342 = vmatprep.subr.mxu0 0.0
        %1343 = vmatpush1.msra.mxu0 0.0
        %1344 = vmatprep.subr.mxu0 0.0
        %1345 = vmatpush1.msra.mxu0 0.0
        %1346 = vmatprep.subr.mxu0 0.0
        %1347 = vmatpush1.msra.mxu0 0.0
        %1348 = vmatprep.subr.mxu0 0.0
        %1349 = vmatpush1.msra.mxu0 0.0
        %1350 = vmatprep.subr.mxu0 0.0
        %1351 = vmatpush1.msra.mxu0 0.0
        %1352 = vmatprep.subr.mxu0 0.0
        %1353 = vmatpush1.msra.mxu0 0.0
        %1354 = vmatprep.subr.mxu0 0.0
        %1355 = vmatpush1.msra.mxu0 0.0
        %1356 = vmatprep.subr.mxu0 0.0
        %1357 = vmatpush1.msra.mxu0 0.0
        %1358 = vmatprep.subr.mxu0 0.0
        %1359 = vmatpush1.msra.mxu0 %v1317
        %1360 = vmatprep.subr.mxu0 0.0
        %1361 = vmatpush1.msra.mxu0 %v1316
        %1362 = vmatprep.subr.mxu0 0.0
        %1363 = vmatpush1.msra.mxu0 %v1315
        %1364 = vmatprep.subr.mxu0 0.0
        %1365 = vmatpush1.msra.mxu0 %v1314
        %1366 = vmatprep.subr.mxu0 0.0
        %1367 = vmatpush1.msra.mxu0 %v1313
        %1368 = vmatprep.subr.mxu0 0.0
        %1369 = vmatpush1.msra.mxu0 %v1312
        %1370 = vmatprep.subr.mxu0 0.0
        %1371 = vmatpush1.msra.mxu0 %v1311
        %1372 = vmatprep.subr.mxu0 0.0
        %1373 = vmatpush1.msra.mxu0 %v1310
        %1374 = vmatprep.subr.mxu0 0.0
        %1375 = vmatpush2.msra.mxu0 0.0
        %1376 = vmatprep.subr.mxu0 0.0
        %1377 = vmatpush2.msra.mxu0 0.0
        %1378 = vmatprep.subr.mxu0 0.0
        %1379 = vmatpush2.msra.mxu0 0.0
        %1380 = vmatprep.subr.mxu0 0.0
        %1381 = vmatpush2.msra.mxu0 0.0
        %1382 = vmatprep.subr.mxu0 0.0
        %1383 = vmatpush2.msra.mxu0 0.0
        %1384 = vmatprep.subr.mxu0 0.0
        %1385 = vmatpush2.msra.mxu0 0.0
        %1386 = vmatprep.subr.mxu0 0.0
        %1387 = vmatpush2.msra.mxu0 0.0
        %1388 = vmatprep.subr.mxu0 0.0
        %1389 = vmatpush2.msra.mxu0 0.0
        %1390 = vmatprep.subr.mxu0 0.0
        %1391 = vmatpush2.msra.mxu0 0.0
        %1392 = vmatprep.subr.mxu0 0.0
        %1393 = vmatpush2.msra.mxu0 0.0
        %1394 = vmatprep.subr.mxu0 0.0
        %1395 = vmatpush2.msra.mxu0 0.0
        %1396 = vmatprep.subr.mxu0 0.0
        %1397 = vmatpush2.msra.mxu0 0.0
        %1398 = vmatprep.subr.mxu0 0.0
        %1399 = vmatpush2.msra.mxu0 0.0
        %1400 = vmatprep.subr.mxu0 0.0
        %1401 = vmatpush2.msra.mxu0 0.0
        %1402 = vmatprep.subr.mxu0 0.0
        %1403 = vmatpush2.msra.mxu0 0.0
        %1404 = vmatprep.subr.mxu0 0.0
        %1405 = vmatpush2.msra.mxu0 0.0
        %1406 = vmatprep.mubr.f32.mxu0 0.0
        %1407 = vmatmul.mubr.f32.gmra.mxu0 %v1340
        %v1408 = vpop.f32.mrf.mxu0
        %v1409 = vadd.f32 0.0, %v1408
        %v1410 = vpop.f32.mrf.mxu0
        %1411 = vdwg.mxu0
        %1413 = vrot.lane.b32.xlu0 %v1409, 112
        %v1414 = vpop.permute.xlu0 %1413
        %v1416 = vmax.f32 %v1409, %v1414
        %1418 = vrot.lane.b32.xlu0 %v1416, 80
        %v1419 = vpop.permute.xlu0 %1418
        %vm1421 = vcmask 786048
        %1422 = vst.msk [vmem:[%s179] sm:$0xff] %vm1421, %v1419
        %v1423 = vld [vmem:[%s159 + $0x6] sm:$0x1]
        %v1424 = vld [vmem:[%s159 + $0x16] sm:$0x1]
        %v1425 = vld [vmem:[%s159 + $0x26] sm:$0x1]
        %v1426 = vld [vmem:[%s159 + $0x36] sm:$0x1]
        %v1427 = vld [vmem:[%s159 + $0x46] sm:$0x1]
        %v1428 = vld [vmem:[%s159 + $0x56] sm:$0x1]
        %v1429 = vld [vmem:[%s159 + $0x66] sm:$0x1]
        %v1430 = vld [vmem:[%s159 + $0x76] sm:$0x1]
        %v1431 = vld [vmem:[%s189 + $0x6] sm:$0x1]
        %v1432 = vld [vmem:[%s189 + $0x16] sm:$0x1]
        %v1433 = vld [vmem:[%s189 + $0x26] sm:$0x1]
        %v1434 = vld [vmem:[%s189 + $0x36] sm:$0x1]
        %v1435 = vld [vmem:[%s189 + $0x46] sm:$0x1]
        %v1436 = vld [vmem:[%s189 + $0x56] sm:$0x1]
        %v1437 = vld [vmem:[%s189 + $0x66] sm:$0x1]
        %v1438 = vld [vmem:[%s189 + $0x76] sm:$0x1]
        %v1439 = vmax.f32 %v1423, %v1431
        %v1440 = vmax.f32 %v1424, %v1432
        %v1441 = vmax.f32 %v1425, %v1433
        %v1442 = vmax.f32 %v1426, %v1434
        %v1443 = vmax.f32 %v1427, %v1435
        %v1444 = vmax.f32 %v1428, %v1436
        %v1445 = vmax.f32 %v1429, %v1437
        %v1446 = vmax.f32 %v1430, %v1438
        %v1455 = vrot.slane %v1440, 7
        %v1456 = vsel %vm215, %v1455, %v1439
        %v1457 = vrot.slane %v1441, 6
        %v1458 = vsel %vm218, %v1457, %v1456
        %v1459 = vrot.slane %v1442, 5
        %v1460 = vsel %vm221, %v1459, %v1458
        %v1461 = vrot.slane %v1443, 4
        %v1462 = vsel %vm224, %v1461, %v1460
        %v1463 = vrot.slane %v1444, 3
        %v1464 = vsel %vm227, %v1463, %v1462
        %v1465 = vrot.slane %v1445, 2
        %v1466 = vsel %vm230, %v1465, %v1464
        %v1467 = vrot.slane %v1446, 1
        %v1468 = vsel %vm233, %v1467, %v1466
        %1470 = vrot.lane.b32.xlu0 %v1468, 64
        %v1471 = vpop.permute.xlu0 %1470
        %v1472 = vsel %vm236, %v1471, %v1468
        %1473 = vrot.lane.b32.xlu0 %v1472, 64
        %v1474 = vpop.permute.xlu0 %1473
        %v1475 = vsel %vm236, %v1474, %v1468
        %v1477 = vrot.slane %v1475, 1
        %v1478 = vrot.slane %v1475, 2
        %v1479 = vrot.slane %v1475, 3
        %v1480 = vrot.slane %v1475, 4
        %v1481 = vrot.slane %v1475, 5
        %v1482 = vrot.slane %v1475, 6
        %v1483 = vrot.slane %v1475, 7
        %1484 = vrot.lane.b32.xlu0 %v1475, 96
        %v1485 = vpop.permute.xlu0 %1484
        %1486 = vrot.lane.b32.xlu0 %v1477, 96
        %v1487 = vpop.permute.xlu0 %1486
        %1488 = vrot.lane.b32.xlu0 %v1478, 96
        %v1489 = vpop.permute.xlu0 %1488
        %1490 = vrot.lane.b32.xlu0 %v1479, 96
        %v1491 = vpop.permute.xlu0 %1490
        %1492 = vrot.lane.b32.xlu0 %v1480, 96
        %v1493 = vpop.permute.xlu0 %1492
        %1494 = vrot.lane.b32.xlu0 %v1481, 96
        %v1495 = vpop.permute.xlu0 %1494
        %1496 = vrot.lane.b32.xlu0 %v1482, 96
        %v1497 = vpop.permute.xlu0 %1496
        %1498 = vrot.lane.b32.xlu0 %v1483, 96
        %v1499 = vpop.permute.xlu0 %1498
        %v1508 = vmax.f32 %v1439, %v1485
        %v1509 = vmax.f32 %v1440, %v1487
        %v1510 = vmax.f32 %v1441, %v1489
        %v1511 = vmax.f32 %v1442, %v1491
        %v1512 = vmax.f32 %v1443, %v1493
        %v1513 = vmax.f32 %v1444, %v1495
        %v1514 = vmax.f32 %v1445, %v1497
        %v1515 = vmax.f32 %v1446, %v1499
        %v1516 = vld [vmem:[%s1] sm:$0xff]
        %v1517 = vld [vmem:[%s1 + $0x8] sm:$0xff]
        %v1518 = vld [vmem:[%s1 + $0x10] sm:$0xff]
        %v1519 = vld [vmem:[%s1 + $0x18] sm:$0xff]
        %v1520 = vld [vmem:[%s1 + $0x20] sm:$0xff]
        %v1521 = vld [vmem:[%s1 + $0x28] sm:$0xff]
        %v1522 = vld [vmem:[%s1 + $0x30] sm:$0xff]
        %v1523 = vld [vmem:[%s1 + $0x38] sm:$0xff]
        %v1532 = vrot.slane %v1509, 7
        %v1533 = vsel %vm215, %v1532, %v1508
        %v1534 = vrot.slane %v1510, 6
        %v1535 = vsel %vm218, %v1534, %v1533
        %v1536 = vrot.slane %v1511, 5
        %v1537 = vsel %vm221, %v1536, %v1535
        %v1538 = vrot.slane %v1512, 4
        %v1539 = vsel %vm224, %v1538, %v1537
        %v1540 = vrot.slane %v1513, 3
        %v1541 = vsel %vm227, %v1540, %v1539
        %v1542 = vrot.slane %v1514, 2
        %v1543 = vsel %vm230, %v1542, %v1541
        %v1544 = vrot.slane %v1515, 1
        %v1545 = vsel %vm233, %v1544, %v1543
        %v1546 = vsel %vm313, %v1545, 0
        %1548 = vmatprep.subr.mxu0 0.0
        %1549 = vmatpush1.msra.mxu0 0.0
        %1550 = vmatprep.subr.mxu0 0.0
        %1551 = vmatpush1.msra.mxu0 0.0
        %1552 = vmatprep.subr.mxu0 0.0
        %1553 = vmatpush1.msra.mxu0 0.0
        %1554 = vmatprep.subr.mxu0 0.0
        %1555 = vmatpush1.msra.mxu0 0.0
        %1556 = vmatprep.subr.mxu0 0.0
        %1557 = vmatpush1.msra.mxu0 0.0
        %1558 = vmatprep.subr.mxu0 0.0
        %1559 = vmatpush1.msra.mxu0 0.0
        %1560 = vmatprep.subr.mxu0 0.0
        %1561 = vmatpush1.msra.mxu0 0.0
        %1562 = vmatprep.subr.mxu0 0.0
        %1563 = vmatpush1.msra.mxu0 0.0
        %1564 = vmatprep.subr.mxu0 0.0
        %1565 = vmatpush1.msra.mxu0 %v1523
        %1566 = vmatprep.subr.mxu0 0.0
        %1567 = vmatpush1.msra.mxu0 %v1522
        %1568 = vmatprep.subr.mxu0 0.0
        %1569 = vmatpush1.msra.mxu0 %v1521
        %1570 = vmatprep.subr.mxu0 0.0
        %1571 = vmatpush1.msra.mxu0 %v1520
        %1572 = vmatprep.subr.mxu0 0.0
        %1573 = vmatpush1.msra.mxu0 %v1519
        %1574 = vmatprep.subr.mxu0 0.0
        %1575 = vmatpush1.msra.mxu0 %v1518
        %1576 = vmatprep.subr.mxu0 0.0
        %1577 = vmatpush1.msra.mxu0 %v1517
        %1578 = vmatprep.subr.mxu0 0.0
        %1579 = vmatpush1.msra.mxu0 %v1516
        %1580 = vmatprep.subr.mxu0 0.0
        %1581 = vmatpush2.msra.mxu0 0.0
        %1582 = vmatprep.subr.mxu0 0.0
        %1583 = vmatpush2.msra.mxu0 0.0
        %1584 = vmatprep.subr.mxu0 0.0
        %1585 = vmatpush2.msra.mxu0 0.0
        %1586 = vmatprep.subr.mxu0 0.0
        %1587 = vmatpush2.msra.mxu0 0.0
        %1588 = vmatprep.subr.mxu0 0.0
        %1589 = vmatpush2.msra.mxu0 0.0
        %1590 = vmatprep.subr.mxu0 0.0
        %1591 = vmatpush2.msra.mxu0 0.0
        %1592 = vmatprep.subr.mxu0 0.0
        %1593 = vmatpush2.msra.mxu0 0.0
        %1594 = vmatprep.subr.mxu0 0.0
        %1595 = vmatpush2.msra.mxu0 0.0
        %1596 = vmatprep.subr.mxu0 0.0
        %1597 = vmatpush2.msra.mxu0 0.0
        %1598 = vmatprep.subr.mxu0 0.0
        %1599 = vmatpush2.msra.mxu0 0.0
        %1600 = vmatprep.subr.mxu0 0.0
        %1601 = vmatpush2.msra.mxu0 0.0
        %1602 = vmatprep.subr.mxu0 0.0
        %1603 = vmatpush2.msra.mxu0 0.0
        %1604 = vmatprep.subr.mxu0 0.0
        %1605 = vmatpush2.msra.mxu0 0.0
        %1606 = vmatprep.subr.mxu0 0.0
        %1607 = vmatpush2.msra.mxu0 0.0
        %1608 = vmatprep.subr.mxu0 0.0
        %1609 = vmatpush2.msra.mxu0 0.0
        %1610 = vmatprep.subr.mxu0 0.0
        %1611 = vmatpush2.msra.mxu0 0.0
        %1612 = vmatprep.mubr.f32.mxu0 0.0
        %1613 = vmatmul.mubr.f32.gmra.mxu0 %v1546
        %v1614 = vpop.f32.mrf.mxu0
        %v1615 = vadd.f32 0.0, %v1614
        %v1616 = vpop.f32.mrf.mxu0
        %1617 = vdwg.mxu0
        %1619 = vrot.lane.b32.xlu0 %v1615, 112
        %v1620 = vpop.permute.xlu0 %1619
        %v1622 = vmax.f32 %v1615, %v1620
        %1624 = vrot.lane.b32.xlu0 %v1622, 96
        %v1625 = vpop.permute.xlu0 %1624
        %vm1627 = vcmask 917248
        %1628 = vst.msk [vmem:[%s179] sm:$0xff] %vm1627, %v1625
        %v1629 = vld [vmem:[%s159 + $0x7] sm:$0x1]
        %v1630 = vld [vmem:[%s159 + $0x17] sm:$0x1]
        %v1631 = vld [vmem:[%s159 + $0x27] sm:$0x1]
        %v1632 = vld [vmem:[%s159 + $0x37] sm:$0x1]
        %v1633 = vld [vmem:[%s159 + $0x47] sm:$0x1]
        %v1634 = vld [vmem:[%s159 + $0x57] sm:$0x1]
        %v1635 = vld [vmem:[%s159 + $0x67] sm:$0x1]
        %v1636 = vld [vmem:[%s159 + $0x77] sm:$0x1]
        %v1637 = vld [vmem:[%s189 + $0x7] sm:$0x1]
        %v1638 = vld [vmem:[%s189 + $0x17] sm:$0x1]
        %v1639 = vld [vmem:[%s189 + $0x27] sm:$0x1]
        %v1640 = vld [vmem:[%s189 + $0x37] sm:$0x1]
        %v1641 = vld [vmem:[%s189 + $0x47] sm:$0x1]
        %v1642 = vld [vmem:[%s189 + $0x57] sm:$0x1]
        %v1643 = vld [vmem:[%s189 + $0x67] sm:$0x1]
        %v1644 = vld [vmem:[%s189 + $0x77] sm:$0x1]
        %v1645 = vmax.f32 %v1629, %v1637
        %v1646 = vmax.f32 %v1630, %v1638
        %v1647 = vmax.f32 %v1631, %v1639
        %v1648 = vmax.f32 %v1632, %v1640
        %v1649 = vmax.f32 %v1633, %v1641
        %v1650 = vmax.f32 %v1634, %v1642
        %v1651 = vmax.f32 %v1635, %v1643
        %v1652 = vmax.f32 %v1636, %v1644
        %v1661 = vrot.slane %v1646, 7
        %v1662 = vsel %vm215, %v1661, %v1645
        %v1663 = vrot.slane %v1647, 6
        %v1664 = vsel %vm218, %v1663, %v1662
        %v1665 = vrot.slane %v1648, 5
        %v1666 = vsel %vm221, %v1665, %v1664
        %v1667 = vrot.slane %v1649, 4
        %v1668 = vsel %vm224, %v1667, %v1666
        %v1669 = vrot.slane %v1650, 3
        %v1670 = vsel %vm227, %v1669, %v1668
        %v1671 = vrot.slane %v1651, 2
        %v1672 = vsel %vm230, %v1671, %v1670
        %v1673 = vrot.slane %v1652, 1
        %v1674 = vsel %vm233, %v1673, %v1672
        %1676 = vrot.lane.b32.xlu0 %v1674, 64
        %v1677 = vpop.permute.xlu0 %1676
        %v1678 = vsel %vm236, %v1677, %v1674
        %1679 = vrot.lane.b32.xlu0 %v1678, 64
        %v1680 = vpop.permute.xlu0 %1679
        %v1681 = vsel %vm236, %v1680, %v1674
        %v1683 = vrot.slane %v1681, 1
        %v1684 = vrot.slane %v1681, 2
        %v1685 = vrot.slane %v1681, 3
        %v1686 = vrot.slane %v1681, 4
        %v1687 = vrot.slane %v1681, 5
        %v1688 = vrot.slane %v1681, 6
        %v1689 = vrot.slane %v1681, 7
        %1690 = vrot.lane.b32.xlu0 %v1681, 96
        %v1691 = vpop.permute.xlu0 %1690
        %1692 = vrot.lane.b32.xlu0 %v1683, 96
        %v1693 = vpop.permute.xlu0 %1692
        %1694 = vrot.lane.b32.xlu0 %v1684, 96
        %v1695 = vpop.permute.xlu0 %1694
        %1696 = vrot.lane.b32.xlu0 %v1685, 96
        %v1697 = vpop.permute.xlu0 %1696
        %1698 = vrot.lane.b32.xlu0 %v1686, 96
        %v1699 = vpop.permute.xlu0 %1698
        %1700 = vrot.lane.b32.xlu0 %v1687, 96
        %v1701 = vpop.permute.xlu0 %1700
        %1702 = vrot.lane.b32.xlu0 %v1688, 96
        %v1703 = vpop.permute.xlu0 %1702
        %1704 = vrot.lane.b32.xlu0 %v1689, 96
        %v1705 = vpop.permute.xlu0 %1704
        %v1714 = vmax.f32 %v1645, %v1691
        %v1715 = vmax.f32 %v1646, %v1693
        %v1716 = vmax.f32 %v1647, %v1695
        %v1717 = vmax.f32 %v1648, %v1697
        %v1718 = vmax.f32 %v1649, %v1699
        %v1719 = vmax.f32 %v1650, %v1701
        %v1720 = vmax.f32 %v1651, %v1703
        %v1721 = vmax.f32 %v1652, %v1705
        %v1722 = vld [vmem:[%s1] sm:$0xff]
        %v1723 = vld [vmem:[%s1 + $0x8] sm:$0xff]
        %v1724 = vld [vmem:[%s1 + $0x10] sm:$0xff]
        %v1725 = vld [vmem:[%s1 + $0x18] sm:$0xff]
        %v1726 = vld [vmem:[%s1 + $0x20] sm:$0xff]
        %v1727 = vld [vmem:[%s1 + $0x28] sm:$0xff]
        %v1728 = vld [vmem:[%s1 + $0x30] sm:$0xff]
        %v1729 = vld [vmem:[%s1 + $0x38] sm:$0xff]
        %v1738 = vrot.slane %v1715, 7
        %v1739 = vsel %vm215, %v1738, %v1714
        %v1740 = vrot.slane %v1716, 6
        %v1741 = vsel %vm218, %v1740, %v1739
        %v1742 = vrot.slane %v1717, 5
        %v1743 = vsel %vm221, %v1742, %v1741
        %v1744 = vrot.slane %v1718, 4
        %v1745 = vsel %vm224, %v1744, %v1743
        %v1746 = vrot.slane %v1719, 3
        %v1747 = vsel %vm227, %v1746, %v1745
        %v1748 = vrot.slane %v1720, 2
        %v1749 = vsel %vm230, %v1748, %v1747
        %v1750 = vrot.slane %v1721, 1
        %v1751 = vsel %vm233, %v1750, %v1749
        %v1752 = vsel %vm313, %v1751, 0
        %1754 = vmatprep.subr.mxu0 0.0
        %1755 = vmatpush1.msra.mxu0 0.0
        %1756 = vmatprep.subr.mxu0 0.0
        %1757 = vmatpush1.msra.mxu0 0.0
        %1758 = vmatprep.subr.mxu0 0.0
        %1759 = vmatpush1.msra.mxu0 0.0
        %1760 = vmatprep.subr.mxu0 0.0
        %1761 = vmatpush1.msra.mxu0 0.0
        %1762 = vmatprep.subr.mxu0 0.0
        %1763 = vmatpush1.msra.mxu0 0.0
        %1764 = vmatprep.subr.mxu0 0.0
        %1765 = vmatpush1.msra.mxu0 0.0
        %1766 = vmatprep.subr.mxu0 0.0
        %1767 = vmatpush1.msra.mxu0 0.0
        %1768 = vmatprep.subr.mxu0 0.0
        %1769 = vmatpush1.msra.mxu0 0.0
        %1770 = vmatprep.subr.mxu0 0.0
        %1771 = vmatpush1.msra.mxu0 %v1729
        %1772 = vmatprep.subr.mxu0 0.0
        %1773 = vmatpush1.msra.mxu0 %v1728
        %1774 = vmatprep.subr.mxu0 0.0
        %1775 = vmatpush1.msra.mxu0 %v1727
        %1776 = vmatprep.subr.mxu0 0.0
        %1777 = vmatpush1.msra.mxu0 %v1726
        %1778 = vmatprep.subr.mxu0 0.0
        %1779 = vmatpush1.msra.mxu0 %v1725
        %1780 = vmatprep.subr.mxu0 0.0
        %1781 = vmatpush1.msra.mxu0 %v1724
        %1782 = vmatprep.subr.mxu0 0.0
        %1783 = vmatpush1.msra.mxu0 %v1723
        %1784 = vmatprep.subr.mxu0 0.0
        %1785 = vmatpush1.msra.mxu0 %v1722
        %1786 = vmatprep.subr.mxu0 0.0
        %1787 = vmatpush2.msra.mxu0 0.0
        %1788 = vmatprep.subr.mxu0 0.0
        %1789 = vmatpush2.msra.mxu0 0.0
        %1790 = vmatprep.subr.mxu0 0.0
        %1791 = vmatpush2.msra.mxu0 0.0
        %1792 = vmatprep.subr.mxu0 0.0
        %1793 = vmatpush2.msra.mxu0 0.0
        %1794 = vmatprep.subr.mxu0 0.0
        %1795 = vmatpush2.msra.mxu0 0.0
        %1796 = vmatprep.subr.mxu0 0.0
        %1797 = vmatpush2.msra.mxu0 0.0
        %1798 = vmatprep.subr.mxu0 0.0
        %1799 = vmatpush2.msra.mxu0 0.0
        %1800 = vmatprep.subr.mxu0 0.0
        %1801 = vmatpush2.msra.mxu0 0.0
        %1802 = vmatprep.subr.mxu0 0.0
        %1803 = vmatpush2.msra.mxu0 0.0
        %1804 = vmatprep.subr.mxu0 0.0
        %1805 = vmatpush2.msra.mxu0 0.0
        %1806 = vmatprep.subr.mxu0 0.0
        %1807 = vmatpush2.msra.mxu0 0.0
        %1808 = vmatprep.subr.mxu0 0.0
        %1809 = vmatpush2.msra.mxu0 0.0
        %1810 = vmatprep.subr.mxu0 0.0
        %1811 = vmatpush2.msra.mxu0 0.0
        %1812 = vmatprep.subr.mxu0 0.0
        %1813 = vmatpush2.msra.mxu0 0.0
        %1814 = vmatprep.subr.mxu0 0.0
        %1815 = vmatpush2.msra.mxu0 0.0
        %1816 = vmatprep.subr.mxu0 0.0
        %1817 = vmatpush2.msra.mxu0 0.0
        %1818 = vmatprep.mubr.f32.mxu0 0.0
        %1819 = vmatmul.mubr.f32.gmra.mxu0 %v1752
        %v1820 = vpop.f32.mrf.mxu0
        %v1821 = vadd.f32 0.0, %v1820
        %v1822 = vpop.f32.mrf.mxu0
        %1823 = vdwg.mxu0
        %1825 = vrot.lane.b32.xlu0 %v1821, 112
        %v1826 = vpop.permute.xlu0 %1825
        %v1828 = vmax.f32 %v1821, %v1826
        %1830 = vrot.lane.b32.xlu0 %v1828, 112
        %v1831 = vpop.permute.xlu0 %1830
        %vm1833 = vcmask 1048448
        %1834 = vst.msk [vmem:[%s179] sm:$0xff] %vm1833, %v1831
        %s1835 = sand.u32 %s90, 1
        %s1836 = scalar_lea.sflag [#allocation4], %s1835
        %s1837 = sand.u32 %s90, 1
        %s1838 = smul.addr %s1837, 8
        %s1839 = scalar_lea.vmem [#allocation5], %s1838
        // Predicated region
        $region33: #{tpu_custom_call.1} parent=27 // pred_check
          %p1840 = pneg %p100
        $region34: #{tpu_custom_call.1} parent=27 // pred_check_branch
          %1842 = sbr.rel (%p1840) target = $region36
        $region35: #{tpu_custom_call.1} parent=27 // pred_region
          %s1844 = ssub.s32 128, 128
          %1845 = vsyncadd %s1836, %s1844
          %s1846 = sadd.s32 %s24, %s23
          %s1847 = smul.addr %s1846, 128
          %s1848 = scalar_lea.hbm %s2, %s1847
          %s1850 = sshll.u32 %s1839, 4
          %s1851 = int_to_ptr.vmem [resolvable:$true] %s1850
          %1853 = dma.vmem_to_hbm [thread:$0]  %s1851, 128, %s1848, %s1836
        $region36: #{tpu_custom_call.1} parent=27 // pred_fallthru
          _
      $region28: #{tpu_custom_call.1} parent=5 // pred_fallthru
        _
      %p1854 = scmp.le.s32.totalorder 2, %s14
      // Predicated region
      $region37: #{tpu_custom_call.1} parent=5 // pred_check
        %p1855 = pneg %p1854
      $region38: #{tpu_custom_call.1} parent=5 // pred_check_branch
        %1857 = sbr.rel (%p1855) target = $region40
      $region39: #{tpu_custom_call.1} parent=5 // pred_region
        %s1858 = ssub.s32 %s14, 2
        // Predicated region
        $region41: #{tpu_custom_call.1} parent=39 // pred_check
          %p1859 = pneg %p106
        $region42: #{tpu_custom_call.1} parent=39 // pred_check_branch
          %1861 = sbr.rel (%p1859) target = $region44
        $region43: #{tpu_custom_call.1} parent=39 // pred_region
          %s1862 = sand.u32 %s91, 1
          %s1863 = scalar_lea.sflag [#allocation4], %s1862
          %s1864 = sand.u32 %s91, 1
          %s1865 = smul.addr %s1864, 8
          %s1866 = scalar_lea.vmem [#allocation5], %s1865
          %1867 = dma.done %s1863, 128
        $region44: #{tpu_custom_call.1} parent=39 // pred_fallthru
          _
      $region40: #{tpu_custom_call.1} parent=5 // pred_fallthru
        _
    $region6: #{tpu_custom_call.1} parent=1 // loop_footer
      %s18 = sadd.s32 1, %s14
    $region7: #{tpu_custom_call.1} parent=1 // loop_footer_branch
      %13 = sbr.rel target = $region3
    $region8: #{tpu_custom_call.1} parent=1 // loop_exit
      _
    %1868 = vsyncpa [#allocation3], 1
    %s1869 = scalar_lea.sflag [#allocation3], 1
    %1870 = vsyncpa %s1869, 1
    %1871 = vsyncpa [#allocation4], 1
    %s1872 = scalar_lea.sflag [#allocation4], 1
    %1873 = vsyncpa %s1872, 1

</llo_original>
